<compile_context>
chip_gen: v6e
topology: v6e:2x2x1
jax: 0.10.0
libtpu: 0.0.40
codegen_flags: <defaults>
</compile_context>

<pallas_src>
import jax
import jax.numpy as jnp
from jax import lax
from jax.experimental import pallas as pl
from jax.experimental.pallas import tpu as pltpu

_HIGHEST = lax.Precision.HIGHEST

_VMEM_LIMIT_BYTES = 48 * 1024 * 1024     # explicit scoped-VMEM limit (safe on v5e/v6e/v7x)
_FUSED_SLAB_BYTES = 4 * 1024 * 1024      # fuse GAP in-kernel when C*S*itemsize <= this
_TILE_TARGET_BYTES = 3 * 1024 * 1024     # per-step (C,TS) byte target for the tiled path


# ----------------------------------------------------------------------------
# SCSEModule Pallas kernels
# ----------------------------------------------------------------------------
def _scse_fused_kernel(x_ref, w1t_ref, b1_ref, w2_ref, b2_ref, wsb_ref, o_ref):
    """Whole (C, S) slab for one batch: GAP + cSE FCs + sSE + fused apply."""
    x = x_ref[0]                                   # (C, S)  S on lanes, C on sublanes
    xf = x.astype(jnp.float32)
    c, s = x.shape

    # cSE: global average pool over S (lane/XLU reduction) + two tiny FC layers
    # done on the VPU/XLU (no degenerate lane-1 MXU matmuls).
    pooled = jnp.sum(xf, axis=1, keepdims=True) * (1.0 / s)                    # (C, 1)
    w1t = w1t_ref[...].astype(jnp.float32)                                     # (C, Cr)
    b1 = b1_ref[...].astype(jnp.float32)                                       # (1, Cr)
    w2 = w2_ref[...].astype(jnp.float32)                                       # (C, Cr)
    b2 = b2_ref[...].astype(jnp.float32)                                       # (C, 1)
    z1 = jnp.maximum(jnp.sum(w1t * pooled, axis=0, keepdims=True) + b1, 0.0)   # (1, Cr)
    c_gate = jax.nn.sigmoid(jnp.sum(w2 * z1, axis=1, keepdims=True) + b2)      # (C, 1)

    # sSE: 1x1x1 conv C->1 == per-position channel dot; VPU multiply + sublane
    # (XLU) reduction; sigmoid on the EUP.
    ws = wsb_ref[:, 0:1].astype(jnp.float32)                                   # (C, 1)
    bs = wsb_ref[0:1, 1:2].astype(jnp.float32)                                 # (1, 1)
    s_gate = jax.nn.sigmoid(jnp.sum(xf * ws, axis=0, keepdims=True) + bs)      # (1, S)

    # x*cSE + x*sSE == x * (cSE + sSE)  (one full-tile multiply)
    o_ref[0] = (xf * (c_gate + s_gate)).astype(o_ref.dtype)


def _scse_tiled_kernel(x_ref, cw_ref, o_ref):
    """One (1, C, TS) tile: out = x * (c_gate + sigmoid(sum_c(ws * x) + bs))."""
    x = x_ref[0].astype(jnp.float32)               # (C, TS)
    cw = cw_ref[0].astype(jnp.float32)             # (C, 3) packed tiny params
    ws = cw[:, 0:1]                                # sSE weight
    c_gate = cw[:, 1:2]                            # precomputed cSE gate
    bs = cw[0:1, 2:3]                              # sSE bias

    s_gate = jax.nn.sigmoid(jnp.sum(x * ws, axis=0, keepdims=True) + bs)       # (1, TS)
    o_ref[0] = (x * (c_gate + s_gate)).astype(o_ref.dtype)


def _round_up(v, m):
    return (v + m - 1) // m * m


def _pick_s_tile(c, s, itemsize, n):
    """S tile: ~_TILE_TARGET_BYTES per (C, TS) slab, multiple of 128."""
    ts = max(128, (_TILE_TARGET_BYTES // max(c * itemsize, 1)) // 128 * 128)
    ts = min(ts, _round_up(s, 128))                 # never larger than (padded) S
    if n == 1:
        # keep >=2 S tiles so both TensorCores (v7x megacore) get work
        ts = min(ts, max(128, _round_up(pl.cdiv(s, 2), 128)))
    return ts


def scse_forward(x_ncs, params, *, force_tiled=False):
    """SCSEModule forward on a channels-first, spatially-flattened tensor.

    x_ncs: (N, C, S) with S = D*H*W.  Returns (N, C, S), same dtype as input.
    params = (w1, b1, w2, b2, ws, bs) with PyTorch Conv3d(kernel_size=1) shapes.
    """
    w1, b1, w2, b2, ws, bs = params
    n, c, s = x_ncs.shape
    cr = w1.shape[0]
    itemsize = jnp.dtype(x_ncs.dtype).itemsize

    cost = pl.CostEstimate(
        flops=int(5 * n * c * s),
        transcendentals=int(n * s + n * c),
        bytes_accessed=int(2 * n * c * s * itemsize),
    )

    slab_bytes = c * s * itemsize
    if slab_bytes <= _FUSED_SLAB_BYTES and not force_tiled:
        # ---- Fused path: one HBM read + one HBM write of x; GAP/FCs in-kernel.
        w1t = w1.reshape(cr, c).T.astype(jnp.float32)                          # (C, Cr)
        b1r = b1.reshape(1, cr).astype(jnp.float32)
        w2r = w2.reshape(c, cr).astype(jnp.float32)
        b2r = b2.reshape(c, 1).astype(jnp.float32)
        wsb = jnp.concatenate(
            [ws.reshape(c, 1).astype(jnp.float32),
             jnp.broadcast_to(bs.reshape(1, 1).astype(jnp.float32), (c, 1))],
            axis=1)                                                            # (C, 2)

        return pl.pallas_call(
            _scse_fused_kernel,
            out_shape=jax.ShapeDtypeStruct((n, c, s), x_ncs.dtype),
            grid_spec=pltpu.PrefetchScalarGridSpec(
                num_scalar_prefetch=0,
                grid=(n,),
                in_specs=[
                    pl.BlockSpec((1, c, s), lambda i: (i, 0, 0)),   # x slab
                    pl.BlockSpec((c, cr), lambda i: (0, 0)),        # w1^T
                    pl.BlockSpec((1, cr), lambda i: (0, 0)),        # b1
                    pl.BlockSpec((c, cr), lambda i: (0, 0)),        # w2
                    pl.BlockSpec((c, 1), lambda i: (0, 0)),         # b2
                    pl.BlockSpec((c, 2), lambda i: (0, 0)),         # [ws, bs]
                ],
                out_specs=pl.BlockSpec((1, c, s), lambda i: (i, 0, 0)),
            ),
            compiler_params=pltpu.CompilerParams(
                dimension_semantics=("parallel",),
                vmem_limit_bytes=_VMEM_LIMIT_BYTES),
            cost_estimate=cost,
        )(x_ncs, w1t, b1r, w2r, b2r, wsb)

    # ---- Tiled fallback (large volumes): cSE gate hoisted to XLA (tiny (N, C)
    # math, dtype-accumulated mean so no f32 upcast copy of x), the
    # bandwidth-heavy apply is tiled along S with a ragged last block.
    pooled = jnp.mean(x_ncs, axis=2, dtype=jnp.float32)                        # (N, C)
    z1 = jnp.maximum(
        jnp.dot(pooled, w1.reshape(cr, c).T, precision=_HIGHEST) + b1, 0.0)
    c_gate = jax.nn.sigmoid(
        jnp.dot(z1, w2.reshape(c, cr).T, precision=_HIGHEST) + b2)             # (N, C)

    ws_row = jnp.broadcast_to(ws.reshape(1, c).astype(jnp.float32), (n, c))
    bs_row = jnp.broadcast_to(bs.reshape(1, 1).astype(jnp.float32), (n, c))
    cw = jnp.stack([ws_row, c_gate.astype(jnp.float32), bs_row], axis=-1)      # (N, C, 3)

    ts = _pick_s_tile(c, s, itemsize, n)
    grid = (n, pl.cdiv(s, ts))

    return pl.pallas_call(
        _scse_tiled_kernel,
        out_shape=jax.ShapeDtypeStruct((n, c, s), x_ncs.dtype),
        grid_spec=pltpu.PrefetchScalarGridSpec(
            num_scalar_prefetch=0,
            grid=grid,
            in_specs=[
                pl.BlockSpec((1, c, ts), lambda i, j: (i, 0, j)),   # x tile
                pl.BlockSpec((1, c, 3), lambda i, j: (i, 0, 0)),    # packed params
            ],
            out_specs=pl.BlockSpec((1, c, ts), lambda i, j: (i, 0, j)),
        ),
        compiler_params=pltpu.CompilerParams(
            dimension_semantics=("parallel", "parallel"),
            vmem_limit_bytes=_VMEM_LIMIT_BYTES),
        cost_estimate=cost,
    )(x_ncs, cw)


def scse_apply(x_ncdhw, params, *, force_tiled=False):
    """SCSE on an NCDHW tensor — pure reshape to (N, C, S), no transposes."""
    n, c, d, h, w = x_ncdhw.shape
    out = scse_forward(x_ncdhw.reshape(n, c, d * h * w), params,
                       force_tiled=force_tiled)
    return out.reshape(n, c, d, h, w)


# ----------------------------------------------------------------------------
# Conv3dReLU (3x3x3 conv + BN + ReLU) and the DecoderBlock forward
# ----------------------------------------------------------------------------
def conv3d_bn_relu(x, w, gamma, beta, mean, var, eps=1e-5):
    # TODO(synk): the 3x3x3 Conv3d stays on XLA's native conv — a halo-tiled
    # Pallas stencil kernel is out of scope here.  BatchNorm3d is applied in
    # inference mode (folded running statistics).  Default precision (bf16-
    # native MXU path) instead of HIGHEST: the convs are the FLOP-dominant part.
    y = lax.conv_general_dilated(
        x, w, window_strides=(1, 1, 1), padding=((1, 1), (1, 1), (1, 1)),
        dimension_numbers=("NCDHW", "OIDHW", "NCDHW"))
    inv = gamma / jnp.sqrt(var + eps)
    scale = inv[None, :, None, None, None]
    shift = (beta - mean * inv)[None, :, None, None, None]
    return jnp.maximum(y * scale + shift, 0.0)


def _upsample2_nearest(x):
    # F.interpolate(scale_factor=2, mode='nearest'): single broadcast + reshape.
    n, c, d, h, w = x.shape
    y = jnp.broadcast_to(x[:, :, :, None, :, None, :, None],
                         (n, c, d, 2, h, 2, w, 2))
    return y.reshape(n, c, 2 * d, 2 * h, 2 * w)


def decoder_block_forward(x, skip, params):
    """DecoderBlock.forward: upsample x2 -> concat skip -> scse -> conv1 -> conv2 -> scse."""
    # TODO(synk): folding the nearest-upsample + channel-concat into the SCSE
    # kernel's input side (two inputs with //2 spatial index maps) would remove
    # one more HBM pass; left to XLA here.
    x = _upsample2_nearest(x)
    if skip is not None:
        x = jnp.concatenate([x, skip], axis=1)
        x = scse_apply(x, params["att1"])            # attention1 (Pallas SCSE)
    x = conv3d_bn_relu(x, *params["conv1"])
    x = conv3d_bn_relu(x, *params["conv2"])
    x = scse_apply(x, params["att2"])                # attention2 (Pallas SCSE)
    return x


# ----------------------------------------------------------------------------
# Pure-JAX references (same semantics, no Pallas)
# ----------------------------------------------------------------------------
def _scse_reference(x, params):
    w1, b1, w2, b2, ws, bs = params
    n, c = x.shape[:2]
    cr = w1.shape[0]
    pooled = jnp.mean(x.astype(jnp.float32), axis=(2, 3, 4))                   # (N, C)
    z1 = jnp.maximum(
        jnp.dot(pooled, w1.reshape(cr, c).T, precision=_HIGHEST) + b1, 0.0)
    cse = jax.nn.sigmoid(
        jnp.dot(z1, w2.reshape(c, cr).T, precision=_HIGHEST) + b2)
    cse = cse[:, :, None, None, None]
    sse = jax.nn.sigmoid(
        jnp.einsum("ncdhw,c->ndhw", x.astype(jnp.float32), ws.reshape(c),
                   precision=_HIGHEST) + bs[0])[:, None]
    return (x * cse + x * sse).astype(x.dtype)


def _decoder_reference(x, skip, params):
    x = _upsample2_nearest(x)
    if skip is not None:
        x = jnp.concatenate([x, skip], axis=1)
        x = _scse_reference(x, params["att1"])
    x = conv3d_bn_relu(x, *params["conv1"])
    x = conv3d_bn_relu(x, *params["conv2"])
    x = _scse_reference(x, params["att2"])
    return x


# ----------------------------------------------------------------------------
# Demo / self-test
# ----------------------------------------------------------------------------
def _make_scse_params(key, c, reduction=16):
    cr = max(c // reduction, 1)
    k = jax.random.split(key, 6)
    w1 = jax.random.normal(k[0], (cr, c, 1, 1, 1), jnp.float32) * 0.1
    b1 = jax.random.normal(k[1], (cr,), jnp.float32) * 0.1
    w2 = jax.random.normal(k[2], (c, cr, 1, 1, 1), jnp.float32) * 0.1
    b2 = jax.random.normal(k[3], (c,), jnp.float32) * 0.1
    ws = jax.random.normal(k[4], (1, c, 1, 1, 1), jnp.float32) * 0.1
    bs = jax.random.normal(k[5], (1,), jnp.float32) * 0.1
    return (w1, b1, w2, b2, ws, bs)


def _make_conv_bn_params(key, cin, cout):
    k = jax.random.split(key, 5)
    w = jax.random.normal(k[0], (cout, cin, 3, 3, 3), jnp.float32) * 0.05
    gamma = 1.0 + 0.1 * jax.random.normal(k[1], (cout,), jnp.float32)
    beta = 0.1 * jax.random.normal(k[2], (cout,), jnp.float32)
    mean = 0.1 * jax.random.normal(k[3], (cout,), jnp.float32)
    var = jax.random.uniform(k[4], (cout,), jnp.float32, 0.5, 1.5)
    return (w, gamma, beta, mean, var)


if __name__ == "__main__":
    key = jax.random.PRNGKey(0)
    n = 2
    in_channels, skip_channels, out_channels = 48, 16, 32
    d0 = h0 = w0 = 8  # pre-upsample spatial extent -> 16^3 after upsample, S=4096

    keys = jax.random.split(key, 8)
    x = jax.random.normal(keys[0], (n, in_channels, d0, h0, w0), jnp.float32)
    skip = jax.random.normal(
        keys[1], (n, skip_channels, 2 * d0, 2 * h0, 2 * w0), jnp.float32)

    params = {
        "att1": _make_scse_params(keys[2], in_channels + skip_channels),
        "conv1": _make_conv_bn_params(keys[3], in_channels + skip_channels,
                                      out_channels),
        "conv2": _make_conv_bn_params(keys[4], out_channels, out_channels),
        "att2": _make_scse_params(keys[5], out_channels),
    }

    # --- standalone check of the fused SCSE kernel (slab fits VMEM: S=4096)
    x_cat = jnp.concatenate([_upsample2_nearest(x), skip], axis=1)
    scse_out = scse_apply(x_cat, params["att1"])
    jax.block_until_ready(scse_out)
    scse_ref = _scse_reference(x_cat, params["att1"])
    assert scse_out.shape == x_cat.shape
    assert jnp.allclose(scse_out, scse_ref, atol=5e-5, rtol=1e-5), \
        "fused SCSE kernel mismatch vs reference"

    # --- tiled fallback path, including a ragged (non-128-multiple) S = 1000
    x_odd = jax.random.normal(keys[6], (1, 16, 10, 10, 10), jnp.float32)
    odd_params = _make_scse_params(keys[7], 16)
    tiled_out = scse_apply(x_odd, odd_params, force_tiled=True)
    jax.block_until_ready(tiled_out)
    tiled_ref = _scse_reference(x_odd, odd_params)
    assert jnp.allclose(tiled_out, tiled_ref, atol=5e-5, rtol=1e-5), \
        "tiled SCSE kernel mismatch vs reference"

    # --- also exercise the tiled path on the regular (128-multiple) volume
    tiled_out2 = scse_apply(x_cat, params["att1"], force_tiled=True)
    jax.block_until_ready(tiled_out2)
    assert jnp.allclose(tiled_out2, scse_ref, atol=5e-5, rtol=1e-5), \
        "tiled SCSE kernel (aligned S) mismatch vs reference"

    # --- full DecoderBlock forward (attention_type='scse', use_batchnorm=True)
    out = jax.jit(decoder_block_forward)(x, skip, params)
    jax.block_until_ready(out)
    ref = _decoder_reference(x, skip, params)
    assert out.shape == (n, out_channels, 2 * d0, 2 * h0, 2 * w0)
    assert jnp.allclose(out, ref, atol=2e-4, rtol=2e-4), \
        "DecoderBlock mismatch vs reference"

    print("KERNEL_OK")
</pallas_src>

<mosaic_0001>
module attributes {stable_mosaic.version = 11 : i64} {
  func.func @_scse_fused_kernel(%arg0: i32, %arg1: memref<1x64x4096xf32, #tpu.memory_space<vmem>>, %arg2: memref<64x4xf32, #tpu.memory_space<vmem>>, %arg3: memref<1x4xf32, #tpu.memory_space<vmem>>, %arg4: memref<64x4xf32, #tpu.memory_space<vmem>>, %arg5: memref<64x1xf32, #tpu.memory_space<vmem>>, %arg6: memref<64x2xf32, #tpu.memory_space<vmem>>, %arg7: memref<1x64x4096xf32, #tpu.memory_space<vmem>>) attributes {dimension_semantics = [#tpu.dimension_semantics<parallel>], iteration_bounds = array<i64: 2>, scalar_prefetch = 0 : i64, scratch_operands = 0 : i64, tpu.core_type = #tpu.core_type<tc>, window_params = [{transform_indices = @transform_0, window_bounds = array<i64: 1, 64, 4096>}, {pipeline_mode = #tpu.pipeline_mode<synchronous>, transform_indices = @transform_1, window_bounds = array<i64: 64, 4>}, {pipeline_mode = #tpu.pipeline_mode<synchronous>, transform_indices = @transform_2, window_bounds = array<i64: 1, 4>}, {pipeline_mode = #tpu.pipeline_mode<synchronous>, transform_indices = @transform_3, window_bounds = array<i64: 64, 4>}, {pipeline_mode = #tpu.pipeline_mode<synchronous>, transform_indices = @transform_4, window_bounds = array<i64: 64, 1>}, {pipeline_mode = #tpu.pipeline_mode<synchronous>, transform_indices = @transform_5, window_bounds = array<i64: 64, 2>}, {transform_indices = @transform_6, window_bounds = array<i64: 1, 64, 4096>}]} {
    %c0 = arith.constant 0 : index
    %c0_0 = arith.constant 0 : index
    %c0_1 = arith.constant 0 : index
    %0 = vector.load %arg1[%c0, %c0_0, %c0_1] : memref<1x64x4096xf32, #tpu.memory_space<vmem>>, vector<1x64x4096xf32>
    %1 = vector.shape_cast %0 : vector<1x64x4096xf32> to vector<64x4096xf32>
    %cst = arith.constant dense<0.000000e+00> : vector<64xf32>
    %2 = vector.multi_reduction <add>, %1, %cst [1] : vector<64x4096xf32> to vector<64xf32>
    %3 = vector.shape_cast %2 : vector<64xf32> to vector<64x1xf32>
    %cst_2 = arith.constant 2.44140625E-4 : f32
    %4 = vector.broadcast %cst_2 : f32 to vector<64x1xf32>
    %5 = arith.mulf %3, %4 : vector<64x1xf32>
    %c0_3 = arith.constant 0 : index
    %c0_4 = arith.constant 0 : index
    %6 = vector.load %arg2[%c0_3, %c0_4] : memref<64x4xf32, #tpu.memory_space<vmem>>, vector<64x4xf32>
    %c0_5 = arith.constant 0 : index
    %c0_6 = arith.constant 0 : index
    %7 = vector.load %arg3[%c0_5, %c0_6] : memref<1x4xf32, #tpu.memory_space<vmem>>, vector<1x4xf32>
    %c0_7 = arith.constant 0 : index
    %c0_8 = arith.constant 0 : index
    %8 = vector.load %arg4[%c0_7, %c0_8] : memref<64x4xf32, #tpu.memory_space<vmem>>, vector<64x4xf32>
    %c0_9 = arith.constant 0 : index
    %c0_10 = arith.constant 0 : index
    %9 = vector.load %arg5[%c0_9, %c0_10] : memref<64x1xf32, #tpu.memory_space<vmem>>, vector<64x1xf32>
    %10 = vector.broadcast %5 : vector<64x1xf32> to vector<64x4xf32>
    %11 = arith.mulf %6, %10 : vector<64x4xf32>
    %cst_11 = arith.constant dense<0.000000e+00> : vector<4xf32>
    %12 = vector.multi_reduction <add>, %11, %cst_11 [0] : vector<64x4xf32> to vector<4xf32>
    %13 = vector.shape_cast %12 : vector<4xf32> to vector<1x4xf32>
    %14 = arith.addf %13, %7 : vector<1x4xf32>
    %cst_12 = arith.constant 0.000000e+00 : f32
    %15 = vector.broadcast %cst_12 : f32 to vector<1x4xf32>
    %16 = arith.maximumf %14, %15 : vector<1x4xf32>
    %17 = vector.broadcast %16 : vector<1x4xf32> to vector<64x4xf32>
    %18 = arith.mulf %8, %17 : vector<64x4xf32>
    %cst_13 = arith.constant dense<0.000000e+00> : vector<64xf32>
    %19 = vector.multi_reduction <add>, %18, %cst_13 [1] : vector<64x4xf32> to vector<64xf32>
    %20 = vector.shape_cast %19 : vector<64xf32> to vector<64x1xf32>
    %21 = arith.addf %20, %9 : vector<64x1xf32>
    %22 = arith.negf %21 : vector<64x1xf32>
    %23 = math.exp %22 : vector<64x1xf32>
    %cst_14 = arith.constant 1.000000e+00 : f32
    %24 = vector.broadcast %cst_14 : f32 to vector<64x1xf32>
    %25 = arith.addf %24, %23 : vector<64x1xf32>
    %26 = arith.divf %24, %25 : vector<64x1xf32>
    %c0_15 = arith.constant 0 : index
    %c0_16 = arith.constant 0 : index
    %27 = vector.load %arg6[%c0_15, %c0_16] : memref<64x2xf32, #tpu.memory_space<vmem>>, vector<64x1xf32>
    %c0_17 = arith.constant 0 : index
    %c1 = arith.constant 1 : index
    %28 = vector.load %arg6[%c0_17, %c1] : memref<64x2xf32, #tpu.memory_space<vmem>>, vector<1x1xf32>
    %29 = vector.broadcast %27 : vector<64x1xf32> to vector<64x4096xf32>
    %30 = arith.mulf %1, %29 : vector<64x4096xf32>
    %cst_18 = arith.constant dense<0.000000e+00> : vector<4096xf32>
    %31 = vector.multi_reduction <add>, %30, %cst_18 [0] : vector<64x4096xf32> to vector<4096xf32>
    %32 = vector.shape_cast %31 : vector<4096xf32> to vector<1x4096xf32>
    %33 = vector.broadcast %28 : vector<1x1xf32> to vector<1x4096xf32>
    %34 = arith.addf %32, %33 : vector<1x4096xf32>
    %35 = arith.negf %34 : vector<1x4096xf32>
    %36 = math.exp %35 : vector<1x4096xf32>
    %cst_19 = arith.constant 1.000000e+00 : f32
    %37 = vector.broadcast %cst_19 : f32 to vector<1x4096xf32>
    %38 = arith.addf %37, %36 : vector<1x4096xf32>
    %39 = arith.divf %37, %38 : vector<1x4096xf32>
    %40 = vector.broadcast %26 : vector<64x1xf32> to vector<64x4096xf32>
    %41 = vector.broadcast %39 : vector<1x4096xf32> to vector<64x4096xf32>
    %42 = arith.addf %40, %41 : vector<64x4096xf32>
    %43 = arith.mulf %1, %42 : vector<64x4096xf32>
    %c0_20 = arith.constant 0 : index
    %c0_21 = arith.constant 0 : index
    %c0_22 = arith.constant 0 : index
    %44 = vector.load %arg7[%c0_20, %c0_21, %c0_22] : memref<1x64x4096xf32, #tpu.memory_space<vmem>>, vector<1x64x4096xf32>
    %45 = vector.shape_cast %44 : vector<1x64x4096xf32> to vector<64x4096xf32>
    %46 = vector.shape_cast %43 : vector<64x4096xf32> to vector<1x64x4096xf32>
    tpu.vector_store %arg7[%c0_20, %c0_21, %c0_22], %46 {strides = array<i32>} : memref<1x64x4096xf32, #tpu.memory_space<vmem>>, vector<1x64x4096xf32>,
    return
  }
  func.func @transform_0(%arg0: i32) -> (i32, i32, i32) {
    %c0_i32 = arith.constant 0 : i32
    %c0_i32_0 = arith.constant 0 : i32
    %c0_i32_1 = arith.constant 0 : i32
    return %arg0, %c0_i32, %c0_i32_0 : i32, i32, i32
  }
  func.func @transform_1(%arg0: i32) -> (i32, i32) {
    %c0_i32 = arith.constant 0 : i32
    %c0_i32_0 = arith.constant 0 : i32
    %c0_i32_1 = arith.constant 0 : i32
    return %c0_i32, %c0_i32_0 : i32, i32
  }
  func.func @transform_2(%arg0: i32) -> (i32, i32) {
    %c0_i32 = arith.constant 0 : i32
    %c0_i32_0 = arith.constant 0 : i32
    %c0_i32_1 = arith.constant 0 : i32
    return %c0_i32, %c0_i32_0 : i32, i32
  }
  func.func @transform_3(%arg0: i32) -> (i32, i32) {
    %c0_i32 = arith.constant 0 : i32
    %c0_i32_0 = arith.constant 0 : i32
    %c0_i32_1 = arith.constant 0 : i32
    return %c0_i32, %c0_i32_0 : i32, i32
  }
  func.func @transform_4(%arg0: i32) -> (i32, i32) {
    %c0_i32 = arith.constant 0 : i32
    %c0_i32_0 = arith.constant 0 : i32
    %c0_i32_1 = arith.constant 0 : i32
    return %c0_i32, %c0_i32_0 : i32, i32
  }
  func.func @transform_5(%arg0: i32) -> (i32, i32) {
    %c0_i32 = arith.constant 0 : i32
    %c0_i32_0 = arith.constant 0 : i32
    %c0_i32_1 = arith.constant 0 : i32
    return %c0_i32, %c0_i32_0 : i32, i32
  }
  func.func @transform_6(%arg0: i32) -> (i32, i32, i32) {
    %c0_i32 = arith.constant 0 : i32
    %c0_i32_0 = arith.constant 0 : i32
    %c0_i32_1 = arith.constant 0 : i32
    return %arg0, %c0_i32, %c0_i32_0 : i32, i32, i32
  }
}

</mosaic_0001>

<llo_original>
// kernel: tpu_custom_call.1
$region0: #{tpu_custom_call.1}
  #allocation0 [shape = 'u32[]', space=smem, size = 0x4, offset = 0x4, fixed_abs, tag = 'smem constant byte address 0x4 - core index']
  #allocation1 [shape = 'u32[144,128]{1,0:T(1,128)}', space=vmem, size = 0x12000, scoped, tag = 'internal scratch']
  %s0 = inlined_call_operand.hbm [shape: f32[2,64,4096], index: 0, kind: input, shape index: {}]
  %s1 = inlined_call_operand.vmem [shape: f32[64,4], index: 1, kind: input, shape index: {}]
  %s2 = inlined_call_operand.hbm [shape: f32[1,4], index: 2, kind: input, shape index: {}]
  %s3 = inlined_call_operand.vmem [shape: f32[64,4], index: 3, kind: input, shape index: {}]
  %s4 = inlined_call_operand.vmem [shape: f32[64,1], index: 4, kind: input, shape index: {}]
  %s5 = inlined_call_operand.vmem [shape: f32[64,2], index: 5, kind: input, shape index: {}]
  %s6 = inlined_call_operand.hbm [shape: f32[2,64,4096], index: 6, kind: output, shape index: {}]
  %s7 = sld [smem:[#allocation0]]
  $region65: #{tpu_custom_call.1} parent=0
    _
  %s9 = ssub.s32 1, %s7
  %s10 = scalar_select 0, %s9, %s7
  $region1: #{tpu_custom_call.1} parent=0
    #allocation2 [shape = 'u8[2097152]{0}', space=vmem, size = 0x200000, scoped, tag = 'input window, operand 0']
    #allocation3 [shape = 's32[2]{0}', space=sflag, size = 0x8, scoped, tag = 'scoped memory for tpu_custom_call.1']
    #allocation4 [shape = 's32[2]{0}', space=sflag, size = 0x8, scoped, tag = 'scoped memory for tpu_custom_call.1']
    #allocation5 [shape = 'u8[512]{0}', space=vmem, size = 0x400, scoped, tag = 'input window, operand 2, single buffered']
    #allocation6 [shape = 's32[1]{0}', space=sflag, size = 0x4, scoped, tag = 'scoped memory for tpu_custom_call.1']
    #allocation7 [shape = 'u8[2097152]{0}', space=vmem, size = 0x200000, scoped, tag = 'output window, operand 0']
    %11 = vsyncpa [#allocation3], 0
    %s12 = scalar_lea.sflag [#allocation3], 1
    %13 = vsyncpa %s12, 0
    %14 = vsyncpa [#allocation6], 0
    %15 = vsyncpa [#allocation4], 0
    %s16 = scalar_lea.sflag [#allocation4], 1
    %17 = vsyncpa %s16, 0
    loop: start=0, step=1, limit=4
    $region2: #{tpu_custom_call.1} parent=1 // loop_pre_header
      _
    $region3: #{tpu_custom_call.1} parent=1 // loop_header
      %s19 = sphi 0, %s23
      %p20 = scmp.ge.s32.totalorder %s19, 4
      %s29 = sphi 0, %s31
      %s32 = sphi 0, %s29
      %s33 = sphi 0, %s32
      %s49 = sphi 0, %s33
      %s53 = sphi 0, %s53
      %s55 = sphi 0, %s53
      %s56 = sphi 0, %s55
      %s70 = sphi 0, %s56
      %s74 = sphi 0, %s74
      %s76 = sphi 0, %s74
      %s77 = sphi 0, %s76
      %s91 = sphi 0, %s77
      %s95 = sphi 0, %s95
      %s97 = sphi 0, %s95
      %s98 = sphi 0, %s97
      %s112 = sphi 0, %s98
      %s116 = sphi 0, %s116
      %s118 = sphi 0, %s116
      %s119 = sphi 0, %s118
      %s133 = sphi 0, %s119
      %s137 = sphi 0, %s137
      %s139 = sphi 0, %s137
      %s140 = sphi 0, %s139
      %s154 = sphi 0, %s140
      %s160 = sphi 0, %s162
      %s163 = sphi 0, %s160
      %s164 = sphi 0, %s163
      %s180 = sphi 0, %s164
    $region4: #{tpu_custom_call.1} parent=1 // loop_header_branch
      %22 = sbr.rel (%p20) target = $region8
    $region5: #{tpu_custom_call.1} parent=1 // loop_body
      %s24 = ssub.s32 %s19, 1
      %s25 = ssub.s32 %s19, 2
      %s26 = sadd.s32 %s19, 1
      %s27 = ssub.s32 %s19, %s26
      %p28 = scmp.eq.s32.totalorder %s27, 0
      %s30 = sadd.s32 %s29, 1
      %s31 = scalar_select %p28, %s29, %s30
      %p34 = pneg %p28
      %p35 = scmp.eq.s32.totalorder %s19, 1
      %p36 = por %p34, %p35
      %p37 = scmp.ne.s32.totalorder %s29, %s32
      %p38 = scmp.eq.s32.totalorder %s19, 0
      %p39 = por %p37, %p38
      %p40 = scmp.ne.s32.totalorder %s29, %s32
      %p41 = scmp.eq.s32.totalorder %s24, 1
      %p42 = por %p40, %p41
      %p43 = scmp.ne.s32.totalorder %s32, %s33
      %p44 = scmp.eq.s32.totalorder %s24, 0
      %p45 = por %p43, %p44
      %p46 = scmp.ne.s32.totalorder %s32, %s33
      %p47 = scmp.eq.s32.totalorder %s25, 1
      %p48 = por %p46, %p47
      %p50 = scmp.ne.s32.totalorder %s33, %s49
      %p51 = scmp.eq.s32.totalorder %s25, 0
      %p52 = por %p50, %p51
      %s54 = sadd.s32 %s53, 1
      %p57 = scmp.eq.s32.totalorder %s19, 1
      %p58 = scmp.ne.s32.totalorder %s53, %s55
      %p59 = scmp.eq.s32.totalorder %s19, 0
      %p60 = por %p58, %p59
      %p61 = scmp.ne.s32.totalorder %s53, %s55
      %p62 = scmp.eq.s32.totalorder %s24, 1
      %p63 = por %p61, %p62
      %p64 = scmp.ne.s32.totalorder %s55, %s56
      %p65 = scmp.eq.s32.totalorder %s24, 0
      %p66 = por %p64, %p65
      %p67 = scmp.ne.s32.totalorder %s55, %s56
      %p68 = scmp.eq.s32.totalorder %s25, 1
      %p69 = por %p67, %p68
      %p71 = scmp.ne.s32.totalorder %s56, %s70
      %p72 = scmp.eq.s32.totalorder %s25, 0
      %p73 = por %p71, %p72
      %s75 = sadd.s32 %s74, 1
      %p78 = scmp.eq.s32.totalorder %s19, 1
      %p79 = scmp.ne.s32.totalorder %s74, %s76
      %p80 = scmp.eq.s32.totalorder %s19, 0
      %p81 = por %p79, %p80
      %p82 = scmp.ne.s32.totalorder %s74, %s76
      %p83 = scmp.eq.s32.totalorder %s24, 1
      %p84 = por %p82, %p83
      %p85 = scmp.ne.s32.totalorder %s76, %s77
      %p86 = scmp.eq.s32.totalorder %s24, 0
      %p87 = por %p85, %p86
      %p88 = scmp.ne.s32.totalorder %s76, %s77
      %p89 = scmp.eq.s32.totalorder %s25, 1
      %p90 = por %p88, %p89
      %p92 = scmp.ne.s32.totalorder %s77, %s91
      %p93 = scmp.eq.s32.totalorder %s25, 0
      %p94 = por %p92, %p93
      %s96 = sadd.s32 %s95, 1
      %p99 = scmp.eq.s32.totalorder %s19, 1
      %p100 = scmp.ne.s32.totalorder %s95, %s97
      %p101 = scmp.eq.s32.totalorder %s19, 0
      %p102 = por %p100, %p101
      %p103 = scmp.ne.s32.totalorder %s95, %s97
      %p104 = scmp.eq.s32.totalorder %s24, 1
      %p105 = por %p103, %p104
      %p106 = scmp.ne.s32.totalorder %s97, %s98
      %p107 = scmp.eq.s32.totalorder %s24, 0
      %p108 = por %p106, %p107
      %p109 = scmp.ne.s32.totalorder %s97, %s98
      %p110 = scmp.eq.s32.totalorder %s25, 1
      %p111 = por %p109, %p110
      %p113 = scmp.ne.s32.totalorder %s98, %s112
      %p114 = scmp.eq.s32.totalorder %s25, 0
      %p115 = por %p113, %p114
      %s117 = sadd.s32 %s116, 1
      %p120 = scmp.eq.s32.totalorder %s19, 1
      %p121 = scmp.ne.s32.totalorder %s116, %s118
      %p122 = scmp.eq.s32.totalorder %s19, 0
      %p123 = por %p121, %p122
      %p124 = scmp.ne.s32.totalorder %s116, %s118
      %p125 = scmp.eq.s32.totalorder %s24, 1
      %p126 = por %p124, %p125
      %p127 = scmp.ne.s32.totalorder %s118, %s119
      %p128 = scmp.eq.s32.totalorder %s24, 0
      %p129 = por %p127, %p128
      %p130 = scmp.ne.s32.totalorder %s118, %s119
      %p131 = scmp.eq.s32.totalorder %s25, 1
      %p132 = por %p130, %p131
      %p134 = scmp.ne.s32.totalorder %s119, %s133
      %p135 = scmp.eq.s32.totalorder %s25, 0
      %p136 = por %p134, %p135
      %s138 = sadd.s32 %s137, 1
      %p141 = scmp.eq.s32.totalorder %s19, 1
      %p142 = scmp.ne.s32.totalorder %s137, %s139
      %p143 = scmp.eq.s32.totalorder %s19, 0
      %p144 = por %p142, %p143
      %p145 = scmp.ne.s32.totalorder %s137, %s139
      %p146 = scmp.eq.s32.totalorder %s24, 1
      %p147 = por %p145, %p146
      %p148 = scmp.ne.s32.totalorder %s139, %s140
      %p149 = scmp.eq.s32.totalorder %s24, 0
      %p150 = por %p148, %p149
      %p151 = scmp.ne.s32.totalorder %s139, %s140
      %p152 = scmp.eq.s32.totalorder %s25, 1
      %p153 = por %p151, %p152
      %p155 = scmp.ne.s32.totalorder %s140, %s154
      %p156 = scmp.eq.s32.totalorder %s25, 0
      %p157 = por %p155, %p156
      %s158 = ssub.s32 %s19, %s26
      %p159 = scmp.eq.s32.totalorder %s158, 0
      %s161 = sadd.s32 %s160, 1
      %s162 = scalar_select %p159, %s160, %s161
      %p165 = pneg %p159
      %p166 = scmp.eq.s32.totalorder %s19, 1
      %p167 = por %p165, %p166
      %p168 = scmp.ne.s32.totalorder %s160, %s163
      %p169 = scmp.eq.s32.totalorder %s19, 0
      %p170 = por %p168, %p169
      %p171 = scmp.ne.s32.totalorder %s160, %s163
      %p172 = scmp.eq.s32.totalorder %s24, 1
      %p173 = por %p171, %p172
      %p174 = scmp.ne.s32.totalorder %s163, %s164
      %p175 = scmp.eq.s32.totalorder %s24, 0
      %p176 = por %p174, %p175
      %p177 = scmp.ne.s32.totalorder %s163, %s164
      %p178 = scmp.eq.s32.totalorder %s25, 1
      %p179 = por %p177, %p178
      %p181 = scmp.ne.s32.totalorder %s164, %s180
      %p182 = scmp.eq.s32.totalorder %s25, 0
      %p183 = por %p181, %p182
      %p184 = scmp.le.s32.totalorder 1, %s19
      %p185 = scmp.lt.s32.totalorder %s19, 3
      %p186 = pnand %p184, %p185
      %p187 = pneg %p186
      // Predicated region
      $region9: #{tpu_custom_call.1} parent=5 // pred_check
        _
      $region10: #{tpu_custom_call.1} parent=5 // pred_check_branch
        %189 = sbr.rel (%p186) target = $region12
      $region11: #{tpu_custom_call.1} parent=5 // pred_region
        %s190 = ssub.s32 %s19, 1
        // Predicated region
        $region13: #{tpu_custom_call.1} parent=11 // pred_check
          %p191 = pneg %p66
        $region14: #{tpu_custom_call.1} parent=11 // pred_check_branch
          %193 = sbr.rel (%p191) target = $region16
        $region15: #{tpu_custom_call.1} parent=11 // pred_region
          _
        $region16: #{tpu_custom_call.1} parent=11 // pred_fallthru
          _
        // Predicated region
        $region17: #{tpu_custom_call.1} parent=11 // pred_check
          %p194 = pneg %p87
        $region18: #{tpu_custom_call.1} parent=11 // pred_check_branch
          %196 = sbr.rel (%p194) target = $region20
        $region19: #{tpu_custom_call.1} parent=11 // pred_region
          %s198 = ssub.s32 16, 16
          %199 = vsyncadd [#allocation6], %s198
          %s201 = sshll.u32 [#allocation5], 4
          %s202 = int_to_ptr.vmem [resolvable:$true] %s201
          %204 = dma.hbm_to_vmem [thread:$0]  %s2, 16, %s202, [#allocation6]
        $region20: #{tpu_custom_call.1} parent=11 // pred_fallthru
          _
        // Predicated region
        $region21: #{tpu_custom_call.1} parent=11 // pred_check
          %p205 = pneg %p108
        $region22: #{tpu_custom_call.1} parent=11 // pred_check_branch
          %207 = sbr.rel (%p205) target = $region24
        $region23: #{tpu_custom_call.1} parent=11 // pred_region
          _
        $region24: #{tpu_custom_call.1} parent=11 // pred_fallthru
          _
        // Predicated region
        $region25: #{tpu_custom_call.1} parent=11 // pred_check
          %p208 = pneg %p129
        $region26: #{tpu_custom_call.1} parent=11 // pred_check_branch
          %210 = sbr.rel (%p208) target = $region28
        $region27: #{tpu_custom_call.1} parent=11 // pred_region
          _
        $region28: #{tpu_custom_call.1} parent=11 // pred_fallthru
          _
        // Predicated region
        $region29: #{tpu_custom_call.1} parent=11 // pred_check
          %p211 = pneg %p150
        $region30: #{tpu_custom_call.1} parent=11 // pred_check_branch
          %213 = sbr.rel (%p211) target = $region32
        $region31: #{tpu_custom_call.1} parent=11 // pred_region
          _
        $region32: #{tpu_custom_call.1} parent=11 // pred_fallthru
          _
      $region12: #{tpu_custom_call.1} parent=5 // pred_fallthru
        _
      %p214 = scmp.lt.s32.totalorder %s19, 2
      // Predicated region
      $region33: #{tpu_custom_call.1} parent=5 // pred_check
        %p215 = pneg %p214
      $region34: #{tpu_custom_call.1} parent=5 // pred_check_branch
        %217 = sbr.rel (%p215) target = $region36
      $region35: #{tpu_custom_call.1} parent=5 // pred_region
        // Predicated region
        $region37: #{tpu_custom_call.1} parent=35 // pred_check
          %p218 = pneg %p39
        $region38: #{tpu_custom_call.1} parent=35 // pred_check_branch
          %220 = sbr.rel (%p218) target = $region40
        $region39: #{tpu_custom_call.1} parent=35 // pred_region
          %s221 = sand.u32 %s29, 1
          %s222 = scalar_lea.sflag [#allocation3], %s221
          %s223 = sand.u32 %s29, 1
          %s224 = smul.addr %s223, 2048
          %s225 = scalar_lea.vmem [#allocation2], %s224
          %s227 = ssub.s32 32768, 32768
          %228 = vsyncadd %s222, %s227
          %s229 = smul.addr %s19, 256
          %s230 = smul.addr %s229, 128
          %s231 = scalar_lea.hbm %s0, %s230
          %s232 = sshll.u32 %s225, 4
          %s233 = int_to_ptr.vmem [resolvable:$true] %s232
          %238 = dma.hbm_to_vmem [thread:$0]  %s231, 32768, %s233, %s222, 4096, 4096, 256
        $region40: #{tpu_custom_call.1} parent=35 // pred_fallthru
          _
      $region36: #{tpu_custom_call.1} parent=5 // pred_fallthru
        _
      %p239 = scmp.le.s32.totalorder 1, %s19
      %p240 = scmp.lt.s32.totalorder %s19, 3
      %p241 = pnand %p239, %p240
      %p242 = pneg %p241
      // Predicated region
      $region41: #{tpu_custom_call.1} parent=5 // pred_check
        _
      $region42: #{tpu_custom_call.1} parent=5 // pred_check_branch
        %244 = sbr.rel (%p241) target = $region44
      $region43: #{tpu_custom_call.1} parent=5 // pred_region
        %s245 = ssub.s32 %s19, 1
        %s246 = sand.u32 %s32, 1
        %s247 = scalar_lea.sflag [#allocation3], %s246
        %s248 = sand.u32 %s32, 1
        %s249 = smul.addr %s248, 2048
        %s250 = scalar_lea.vmem [#allocation2], %s249
        // Predicated region
        $region45: #{tpu_custom_call.1} parent=43 // pred_check
          %p251 = pneg %p45
        $region46: #{tpu_custom_call.1} parent=43 // pred_check_branch
          %253 = sbr.rel (%p251) target = $region48
        $region47: #{tpu_custom_call.1} parent=43 // pred_region
          %254 = dma.done %s247, 32768
        $region48: #{tpu_custom_call.1} parent=43 // pred_fallthru
          _
        // Predicated region
        $region49: #{tpu_custom_call.1} parent=43 // pred_check
          %p255 = pneg %p87
        $region50: #{tpu_custom_call.1} parent=43 // pred_check_branch
          %257 = sbr.rel (%p255) target = $region52
        $region51: #{tpu_custom_call.1} parent=43 // pred_region
          %258 = dma.done [#allocation6], 16
        $region52: #{tpu_custom_call.1} parent=43 // pred_fallthru
          _
        %s259 = sand.u32 %s32, 1
        %s260 = scalar_lea.sflag [#allocation3], %s259
        %s261 = sand.u32 %s32, 1
        %s262 = smul.addr %s261, 2048
        %s263 = scalar_lea.vmem [#allocation2], %s262
        %p264 = pneg %p45
        %p265 = pneg %p42
        %p266 = pneg %p66
        %p267 = pneg %p63
        %p268 = pneg %p87
        %p269 = pneg %p84
        %p270 = pneg %p108
        %p271 = pneg %p105
        %p272 = pneg %p129
        %p273 = pneg %p126
        %p274 = pneg %p150
        %p275 = pneg %p147
        %p276 = pneg %p176
        %p277 = pneg %p173
        %s278 = sand.u32 %s163, 1
        %s279 = scalar_lea.sflag [#allocation4], %s278
        %s280 = sand.u32 %s163, 1
        %s281 = smul.addr %s280, 2048
        %s282 = scalar_lea.vmem [#allocation7], %s281
        %v283 = vld [vmem:[%s250] sm:$0xff]
        %v284 = vld [vmem:[%s250 + $0x8] sm:$0xff]
        %v285 = vld [vmem:[%s250 + $0x10] sm:$0xff]
        %v286 = vld [vmem:[%s250 + $0x18] sm:$0xff]
        %v287 = vld [vmem:[%s250 + $0x20] sm:$0xff]
        %v288 = vld [vmem:[%s250 + $0x28] sm:$0xff]
        %v289 = vld [vmem:[%s250 + $0x30] sm:$0xff]
        %v290 = vld [vmem:[%s250 + $0x38] sm:$0xff]
        %v291 = vld [vmem:[%s250 + $0x40] sm:$0xff]
        %v292 = vld [vmem:[%s250 + $0x48] sm:$0xff]
        %v293 = vld [vmem:[%s250 + $0x50] sm:$0xff]
        %v294 = vld [vmem:[%s250 + $0x58] sm:$0xff]
        %v295 = vld [vmem:[%s250 + $0x60] sm:$0xff]
        %v296 = vld [vmem:[%s250 + $0x68] sm:$0xff]
        %v297 = vld [vmem:[%s250 + $0x70] sm:$0xff]
        %v298 = vld [vmem:[%s250 + $0x78] sm:$0xff]
        %v299 = vld [vmem:[%s250 + $0x80] sm:$0xff]
        %v300 = vld [vmem:[%s250 + $0x88] sm:$0xff]
        %v301 = vld [vmem:[%s250 + $0x90] sm:$0xff]
        %v302 = vld [vmem:[%s250 + $0x98] sm:$0xff]
        %v303 = vld [vmem:[%s250 + $0xa0] sm:$0xff]
        %v304 = vld [vmem:[%s250 + $0xa8] sm:$0xff]
        %v305 = vld [vmem:[%s250 + $0xb0] sm:$0xff]
        %v306 = vld [vmem:[%s250 + $0xb8] sm:$0xff]
        %v307 = vld [vmem:[%s250 + $0xc0] sm:$0xff]
        %v308 = vld [vmem:[%s250 + $0xc8] sm:$0xff]
        %v309 = vld [vmem:[%s250 + $0xd0] sm:$0xff]
        %v310 = vld [vmem:[%s250 + $0xd8] sm:$0xff]
        %v311 = vld [vmem:[%s250 + $0xe0] sm:$0xff]
        %v312 = vld [vmem:[%s250 + $0xe8] sm:$0xff]
        %v313 = vld [vmem:[%s250 + $0xf0] sm:$0xff]
        %v314 = vld [vmem:[%s250 + $0xf8] sm:$0xff]
        %v315 = vld [vmem:[%s250 + $0x100] sm:$0xff]
        %v316 = vld [vmem:[%s250 + $0x108] sm:$0xff]
        %v317 = vld [vmem:[%s250 + $0x110] sm:$0xff]
        %v318 = vld [vmem:[%s250 + $0x118] sm:$0xff]
        %v319 = vld [vmem:[%s250 + $0x120] sm:$0xff]
        %v320 = vld [vmem:[%s250 + $0x128] sm:$0xff]
        %v321 = vld [vmem:[%s250 + $0x130] sm:$0xff]
        %v322 = vld [vmem:[%s250 + $0x138] sm:$0xff]
        %v323 = vld [vmem:[%s250 + $0x140] sm:$0xff]
        %v324 = vld [vmem:[%s250 + $0x148] sm:$0xff]
        %v325 = vld [vmem:[%s250 + $0x150] sm:$0xff]
        %v326 = vld [vmem:[%s250 + $0x158] sm:$0xff]
        %v327 = vld [vmem:[%s250 + $0x160] sm:$0xff]
        %v328 = vld [vmem:[%s250 + $0x168] sm:$0xff]
        %v329 = vld [vmem:[%s250 + $0x170] sm:$0xff]
        %v330 = vld [vmem:[%s250 + $0x178] sm:$0xff]
        %v331 = vld [vmem:[%s250 + $0x180] sm:$0xff]
        %v332 = vld [vmem:[%s250 + $0x188] sm:$0xff]
        %v333 = vld [vmem:[%s250 + $0x190] sm:$0xff]
        %v334 = vld [vmem:[%s250 + $0x198] sm:$0xff]
        %v335 = vld [vmem:[%s250 + $0x1a0] sm:$0xff]
        %v336 = vld [vmem:[%s250 + $0x1a8] sm:$0xff]
        %v337 = vld [vmem:[%s250 + $0x1b0] sm:$0xff]
        %v338 = vld [vmem:[%s250 + $0x1b8] sm:$0xff]
        %v339 = vld [vmem:[%s250 + $0x1c0] sm:$0xff]
        %v340 = vld [vmem:[%s250 + $0x1c8] sm:$0xff]
        %v341 = vld [vmem:[%s250 + $0x1d0] sm:$0xff]
        %v342 = vld [vmem:[%s250 + $0x1d8] sm:$0xff]
        %v343 = vld [vmem:[%s250 + $0x1e0] sm:$0xff]
        %v344 = vld [vmem:[%s250 + $0x1e8] sm:$0xff]
        %v345 = vld [vmem:[%s250 + $0x1f0] sm:$0xff]
        %v346 = vld [vmem:[%s250 + $0x1f8] sm:$0xff]
        %v347 = vld [vmem:[%s250 + $0x200] sm:$0xff]
        %v348 = vld [vmem:[%s250 + $0x208] sm:$0xff]
        %v349 = vld [vmem:[%s250 + $0x210] sm:$0xff]
        %v350 = vld [vmem:[%s250 + $0x218] sm:$0xff]
        %v351 = vld [vmem:[%s250 + $0x220] sm:$0xff]
        %v352 = vld [vmem:[%s250 + $0x228] sm:$0xff]
        %v353 = vld [vmem:[%s250 + $0x230] sm:$0xff]
        %v354 = vld [vmem:[%s250 + $0x238] sm:$0xff]
        %v355 = vld [vmem:[%s250 + $0x240] sm:$0xff]
        %v356 = vld [vmem:[%s250 + $0x248] sm:$0xff]
        %v357 = vld [vmem:[%s250 + $0x250] sm:$0xff]
        %v358 = vld [vmem:[%s250 + $0x258] sm:$0xff]
        %v359 = vld [vmem:[%s250 + $0x260] sm:$0xff]
        %v360 = vld [vmem:[%s250 + $0x268] sm:$0xff]
        %v361 = vld [vmem:[%s250 + $0x270] sm:$0xff]
        %v362 = vld [vmem:[%s250 + $0x278] sm:$0xff]
        %v363 = vld [vmem:[%s250 + $0x280] sm:$0xff]
        %v364 = vld [vmem:[%s250 + $0x288] sm:$0xff]
        %v365 = vld [vmem:[%s250 + $0x290] sm:$0xff]
        %v366 = vld [vmem:[%s250 + $0x298] sm:$0xff]
        %v367 = vld [vmem:[%s250 + $0x2a0] sm:$0xff]
        %v368 = vld [vmem:[%s250 + $0x2a8] sm:$0xff]
        %v369 = vld [vmem:[%s250 + $0x2b0] sm:$0xff]
        %v370 = vld [vmem:[%s250 + $0x2b8] sm:$0xff]
        %v371 = vld [vmem:[%s250 + $0x2c0] sm:$0xff]
        %v372 = vld [vmem:[%s250 + $0x2c8] sm:$0xff]
        %v373 = vld [vmem:[%s250 + $0x2d0] sm:$0xff]
        %v374 = vld [vmem:[%s250 + $0x2d8] sm:$0xff]
        %v375 = vld [vmem:[%s250 + $0x2e0] sm:$0xff]
        %v376 = vld [vmem:[%s250 + $0x2e8] sm:$0xff]
        %v377 = vld [vmem:[%s250 + $0x2f0] sm:$0xff]
        %v378 = vld [vmem:[%s250 + $0x2f8] sm:$0xff]
        %v379 = vld [vmem:[%s250 + $0x300] sm:$0xff]
        %v380 = vld [vmem:[%s250 + $0x308] sm:$0xff]
        %v381 = vld [vmem:[%s250 + $0x310] sm:$0xff]
        %v382 = vld [vmem:[%s250 + $0x318] sm:$0xff]
        %v383 = vld [vmem:[%s250 + $0x320] sm:$0xff]
        %v384 = vld [vmem:[%s250 + $0x328] sm:$0xff]
        %v385 = vld [vmem:[%s250 + $0x330] sm:$0xff]
        %v386 = vld [vmem:[%s250 + $0x338] sm:$0xff]
        %v387 = vld [vmem:[%s250 + $0x340] sm:$0xff]
        %v388 = vld [vmem:[%s250 + $0x348] sm:$0xff]
        %v389 = vld [vmem:[%s250 + $0x350] sm:$0xff]
        %v390 = vld [vmem:[%s250 + $0x358] sm:$0xff]
        %v391 = vld [vmem:[%s250 + $0x360] sm:$0xff]
        %v392 = vld [vmem:[%s250 + $0x368] sm:$0xff]
        %v393 = vld [vmem:[%s250 + $0x370] sm:$0xff]
        %v394 = vld [vmem:[%s250 + $0x378] sm:$0xff]
        %v395 = vld [vmem:[%s250 + $0x380] sm:$0xff]
        %v396 = vld [vmem:[%s250 + $0x388] sm:$0xff]
        %v397 = vld [vmem:[%s250 + $0x390] sm:$0xff]
        %v398 = vld [vmem:[%s250 + $0x398] sm:$0xff]
        %v399 = vld [vmem:[%s250 + $0x3a0] sm:$0xff]
        %v400 = vld [vmem:[%s250 + $0x3a8] sm:$0xff]
        %v401 = vld [vmem:[%s250 + $0x3b0] sm:$0xff]
        %v402 = vld [vmem:[%s250 + $0x3b8] sm:$0xff]
        %v403 = vld [vmem:[%s250 + $0x3c0] sm:$0xff]
        %v404 = vld [vmem:[%s250 + $0x3c8] sm:$0xff]
        %v405 = vld [vmem:[%s250 + $0x3d0] sm:$0xff]
        %v406 = vld [vmem:[%s250 + $0x3d8] sm:$0xff]
        %v407 = vld [vmem:[%s250 + $0x3e0] sm:$0xff]
        %v408 = vld [vmem:[%s250 + $0x3e8] sm:$0xff]
        %v409 = vld [vmem:[%s250 + $0x3f0] sm:$0xff]
        %v410 = vld [vmem:[%s250 + $0x3f8] sm:$0xff]
        %v411 = vld [vmem:[%s250 + $0x400] sm:$0xff]
        %v412 = vld [vmem:[%s250 + $0x408] sm:$0xff]
        %v413 = vld [vmem:[%s250 + $0x410] sm:$0xff]
        %v414 = vld [vmem:[%s250 + $0x418] sm:$0xff]
        %v415 = vld [vmem:[%s250 + $0x420] sm:$0xff]
        %v416 = vld [vmem:[%s250 + $0x428] sm:$0xff]
        %v417 = vld [vmem:[%s250 + $0x430] sm:$0xff]
        %v418 = vld [vmem:[%s250 + $0x438] sm:$0xff]
        %v419 = vld [vmem:[%s250 + $0x440] sm:$0xff]
        %v420 = vld [vmem:[%s250 + $0x448] sm:$0xff]
        %v421 = vld [vmem:[%s250 + $0x450] sm:$0xff]
        %v422 = vld [vmem:[%s250 + $0x458] sm:$0xff]
        %v423 = vld [vmem:[%s250 + $0x460] sm:$0xff]
        %v424 = vld [vmem:[%s250 + $0x468] sm:$0xff]
        %v425 = vld [vmem:[%s250 + $0x470] sm:$0xff]
        %v426 = vld [vmem:[%s250 + $0x478] sm:$0xff]
        %v427 = vld [vmem:[%s250 + $0x480] sm:$0xff]
        %v428 = vld [vmem:[%s250 + $0x488] sm:$0xff]
        %v429 = vld [vmem:[%s250 + $0x490] sm:$0xff]
        %v430 = vld [vmem:[%s250 + $0x498] sm:$0xff]
        %v431 = vld [vmem:[%s250 + $0x4a0] sm:$0xff]
        %v432 = vld [vmem:[%s250 + $0x4a8] sm:$0xff]
        %v433 = vld [vmem:[%s250 + $0x4b0] sm:$0xff]
        %v434 = vld [vmem:[%s250 + $0x4b8] sm:$0xff]
        %v435 = vld [vmem:[%s250 + $0x4c0] sm:$0xff]
        %v436 = vld [vmem:[%s250 + $0x4c8] sm:$0xff]
        %v437 = vld [vmem:[%s250 + $0x4d0] sm:$0xff]
        %v438 = vld [vmem:[%s250 + $0x4d8] sm:$0xff]
        %v439 = vld [vmem:[%s250 + $0x4e0] sm:$0xff]
        %v440 = vld [vmem:[%s250 + $0x4e8] sm:$0xff]
        %v441 = vld [vmem:[%s250 + $0x4f0] sm:$0xff]
        %v442 = vld [vmem:[%s250 + $0x4f8] sm:$0xff]
        %v443 = vld [vmem:[%s250 + $0x500] sm:$0xff]
        %v444 = vld [vmem:[%s250 + $0x508] sm:$0xff]
        %v445 = vld [vmem:[%s250 + $0x510] sm:$0xff]
        %v446 = vld [vmem:[%s250 + $0x518] sm:$0xff]
        %v447 = vld [vmem:[%s250 + $0x520] sm:$0xff]
        %v448 = vld [vmem:[%s250 + $0x528] sm:$0xff]
        %v449 = vld [vmem:[%s250 + $0x530] sm:$0xff]
        %v450 = vld [vmem:[%s250 + $0x538] sm:$0xff]
        %v451 = vld [vmem:[%s250 + $0x540] sm:$0xff]
        %v452 = vld [vmem:[%s250 + $0x548] sm:$0xff]
        %v453 = vld [vmem:[%s250 + $0x550] sm:$0xff]
        %v454 = vld [vmem:[%s250 + $0x558] sm:$0xff]
        %v455 = vld [vmem:[%s250 + $0x560] sm:$0xff]
        %v456 = vld [vmem:[%s250 + $0x568] sm:$0xff]
        %v457 = vld [vmem:[%s250 + $0x570] sm:$0xff]
        %v458 = vld [vmem:[%s250 + $0x578] sm:$0xff]
        %v459 = vld [vmem:[%s250 + $0x580] sm:$0xff]
        %v460 = vld [vmem:[%s250 + $0x588] sm:$0xff]
        %v461 = vld [vmem:[%s250 + $0x590] sm:$0xff]
        %v462 = vld [vmem:[%s250 + $0x598] sm:$0xff]
        %v463 = vld [vmem:[%s250 + $0x5a0] sm:$0xff]
        %v464 = vld [vmem:[%s250 + $0x5a8] sm:$0xff]
        %v465 = vld [vmem:[%s250 + $0x5b0] sm:$0xff]
        %v466 = vld [vmem:[%s250 + $0x5b8] sm:$0xff]
        %v467 = vld [vmem:[%s250 + $0x5c0] sm:$0xff]
        %v468 = vld [vmem:[%s250 + $0x5c8] sm:$0xff]
        %v469 = vld [vmem:[%s250 + $0x5d0] sm:$0xff]
        %v470 = vld [vmem:[%s250 + $0x5d8] sm:$0xff]
        %v471 = vld [vmem:[%s250 + $0x5e0] sm:$0xff]
        %v472 = vld [vmem:[%s250 + $0x5e8] sm:$0xff]
        %v473 = vld [vmem:[%s250 + $0x5f0] sm:$0xff]
        %v474 = vld [vmem:[%s250 + $0x5f8] sm:$0xff]
        %v475 = vld [vmem:[%s250 + $0x600] sm:$0xff]
        %v476 = vld [vmem:[%s250 + $0x608] sm:$0xff]
        %v477 = vld [vmem:[%s250 + $0x610] sm:$0xff]
        %v478 = vld [vmem:[%s250 + $0x618] sm:$0xff]
        %v479 = vld [vmem:[%s250 + $0x620] sm:$0xff]
        %v480 = vld [vmem:[%s250 + $0x628] sm:$0xff]
        %v481 = vld [vmem:[%s250 + $0x630] sm:$0xff]
        %v482 = vld [vmem:[%s250 + $0x638] sm:$0xff]
        %v483 = vld [vmem:[%s250 + $0x640] sm:$0xff]
        %v484 = vld [vmem:[%s250 + $0x648] sm:$0xff]
        %v485 = vld [vmem:[%s250 + $0x650] sm:$0xff]
        %v486 = vld [vmem:[%s250 + $0x658] sm:$0xff]
        %v487 = vld [vmem:[%s250 + $0x660] sm:$0xff]
        %v488 = vld [vmem:[%s250 + $0x668] sm:$0xff]
        %v489 = vld [vmem:[%s250 + $0x670] sm:$0xff]
        %v490 = vld [vmem:[%s250 + $0x678] sm:$0xff]
        %v491 = vld [vmem:[%s250 + $0x680] sm:$0xff]
        %v492 = vld [vmem:[%s250 + $0x688] sm:$0xff]
        %v493 = vld [vmem:[%s250 + $0x690] sm:$0xff]
        %v494 = vld [vmem:[%s250 + $0x698] sm:$0xff]
        %v495 = vld [vmem:[%s250 + $0x6a0] sm:$0xff]
        %v496 = vld [vmem:[%s250 + $0x6a8] sm:$0xff]
        %v497 = vld [vmem:[%s250 + $0x6b0] sm:$0xff]
        %v498 = vld [vmem:[%s250 + $0x6b8] sm:$0xff]
        %v499 = vld [vmem:[%s250 + $0x6c0] sm:$0xff]
        %v500 = vld [vmem:[%s250 + $0x6c8] sm:$0xff]
        %v501 = vld [vmem:[%s250 + $0x6d0] sm:$0xff]
        %v502 = vld [vmem:[%s250 + $0x6d8] sm:$0xff]
        %v503 = vld [vmem:[%s250 + $0x6e0] sm:$0xff]
        %v504 = vld [vmem:[%s250 + $0x6e8] sm:$0xff]
        %v505 = vld [vmem:[%s250 + $0x6f0] sm:$0xff]
        %v506 = vld [vmem:[%s250 + $0x6f8] sm:$0xff]
        %v507 = vld [vmem:[%s250 + $0x700] sm:$0xff]
        %v508 = vld [vmem:[%s250 + $0x708] sm:$0xff]
        %v509 = vld [vmem:[%s250 + $0x710] sm:$0xff]
        %v510 = vld [vmem:[%s250 + $0x718] sm:$0xff]
        %v511 = vld [vmem:[%s250 + $0x720] sm:$0xff]
        %v512 = vld [vmem:[%s250 + $0x728] sm:$0xff]
        %v513 = vld [vmem:[%s250 + $0x730] sm:$0xff]
        %v514 = vld [vmem:[%s250 + $0x738] sm:$0xff]
        %v515 = vld [vmem:[%s250 + $0x740] sm:$0xff]
        %v516 = vld [vmem:[%s250 + $0x748] sm:$0xff]
        %v517 = vld [vmem:[%s250 + $0x750] sm:$0xff]
        %v518 = vld [vmem:[%s250 + $0x758] sm:$0xff]
        %v519 = vld [vmem:[%s250 + $0x760] sm:$0xff]
        %v520 = vld [vmem:[%s250 + $0x768] sm:$0xff]
        %v521 = vld [vmem:[%s250 + $0x770] sm:$0xff]
        %v522 = vld [vmem:[%s250 + $0x778] sm:$0xff]
        %v523 = vld [vmem:[%s250 + $0x780] sm:$0xff]
        %v524 = vld [vmem:[%s250 + $0x788] sm:$0xff]
        %v525 = vld [vmem:[%s250 + $0x790] sm:$0xff]
        %v526 = vld [vmem:[%s250 + $0x798] sm:$0xff]
        %v527 = vld [vmem:[%s250 + $0x7a0] sm:$0xff]
        %v528 = vld [vmem:[%s250 + $0x7a8] sm:$0xff]
        %v529 = vld [vmem:[%s250 + $0x7b0] sm:$0xff]
        %v530 = vld [vmem:[%s250 + $0x7b8] sm:$0xff]
        %v531 = vld [vmem:[%s250 + $0x7c0] sm:$0xff]
        %v532 = vld [vmem:[%s250 + $0x7c8] sm:$0xff]
        %v533 = vld [vmem:[%s250 + $0x7d0] sm:$0xff]
        %v534 = vld [vmem:[%s250 + $0x7d8] sm:$0xff]
        %v535 = vld [vmem:[%s250 + $0x7e0] sm:$0xff]
        %v536 = vld [vmem:[%s250 + $0x7e8] sm:$0xff]
        %v537 = vld [vmem:[%s250 + $0x7f0] sm:$0xff]
        %v538 = vld [vmem:[%s250 + $0x7f8] sm:$0xff]
        %v539 = vadd.f32 %v283, %v284
        %v540 = vadd.f32 %v539, %v285
        %v541 = vadd.f32 %v540, %v286
        %v542 = vadd.f32 %v541, %v287
        %v543 = vadd.f32 %v542, %v288
        %v544 = vadd.f32 %v543, %v289
        %v545 = vadd.f32 %v544, %v290
        %v546 = vadd.f32 %v545, %v291
        %v547 = vadd.f32 %v546, %v292
        %v548 = vadd.f32 %v547, %v293
        %v549 = vadd.f32 %v548, %v294
        %v550 = vadd.f32 %v549, %v295
        %v551 = vadd.f32 %v550, %v296
        %v552 = vadd.f32 %v551, %v297
        %v553 = vadd.f32 %v552, %v298
        %v554 = vadd.f32 %v553, %v299
        %v555 = vadd.f32 %v554, %v300
        %v556 = vadd.f32 %v555, %v301
        %v557 = vadd.f32 %v556, %v302
        %v558 = vadd.f32 %v557, %v303
        %v559 = vadd.f32 %v558, %v304
        %v560 = vadd.f32 %v559, %v305
        %v561 = vadd.f32 %v560, %v306
        %v562 = vadd.f32 %v561, %v307
        %v563 = vadd.f32 %v562, %v308
        %v564 = vadd.f32 %v563, %v309
        %v565 = vadd.f32 %v564, %v310
        %v566 = vadd.f32 %v565, %v311
        %v567 = vadd.f32 %v566, %v312
        %v568 = vadd.f32 %v567, %v313
        %v569 = vadd.f32 %v568, %v314
        %570 = vadd.xlane.f32.xlu0 %v569
        %v571 = vpop.xlane.xlu0 %570
        %v572 = vadd.f32 %v315, %v316
        %v573 = vadd.f32 %v572, %v317
        %v574 = vadd.f32 %v573, %v318
        %v575 = vadd.f32 %v574, %v319
        %v576 = vadd.f32 %v575, %v320
        %v577 = vadd.f32 %v576, %v321
        %v578 = vadd.f32 %v577, %v322
        %v579 = vadd.f32 %v578, %v323
        %v580 = vadd.f32 %v579, %v324
        %v581 = vadd.f32 %v580, %v325
        %v582 = vadd.f32 %v581, %v326
        %v583 = vadd.f32 %v582, %v327
        %v584 = vadd.f32 %v583, %v328
        %v585 = vadd.f32 %v584, %v329
        %v586 = vadd.f32 %v585, %v330
        %v587 = vadd.f32 %v586, %v331
        %v588 = vadd.f32 %v587, %v332
        %v589 = vadd.f32 %v588, %v333
        %v590 = vadd.f32 %v589, %v334
        %v591 = vadd.f32 %v590, %v335
        %v592 = vadd.f32 %v591, %v336
        %v593 = vadd.f32 %v592, %v337
        %v594 = vadd.f32 %v593, %v338
        %v595 = vadd.f32 %v594, %v339
        %v596 = vadd.f32 %v595, %v340
        %v597 = vadd.f32 %v596, %v341
        %v598 = vadd.f32 %v597, %v342
        %v599 = vadd.f32 %v598, %v343
        %v600 = vadd.f32 %v599, %v344
        %v601 = vadd.f32 %v600, %v345
        %v602 = vadd.f32 %v601, %v346
        %603 = vadd.xlane.f32.xlu0 %v602
        %v604 = vpop.xlane.xlu0 %603
        %v605 = vadd.f32 %v347, %v348
        %v606 = vadd.f32 %v605, %v349
        %v607 = vadd.f32 %v606, %v350
        %v608 = vadd.f32 %v607, %v351
        %v609 = vadd.f32 %v608, %v352
        %v610 = vadd.f32 %v609, %v353
        %v611 = vadd.f32 %v610, %v354
        %v612 = vadd.f32 %v611, %v355
        %v613 = vadd.f32 %v612, %v356
        %v614 = vadd.f32 %v613, %v357
        %v615 = vadd.f32 %v614, %v358
        %v616 = vadd.f32 %v615, %v359
        %v617 = vadd.f32 %v616, %v360
        %v618 = vadd.f32 %v617, %v361
        %v619 = vadd.f32 %v618, %v362
        %v620 = vadd.f32 %v619, %v363
        %v621 = vadd.f32 %v620, %v364
        %v622 = vadd.f32 %v621, %v365
        %v623 = vadd.f32 %v622, %v366
        %v624 = vadd.f32 %v623, %v367
        %v625 = vadd.f32 %v624, %v368
        %v626 = vadd.f32 %v625, %v369
        %v627 = vadd.f32 %v626, %v370
        %v628 = vadd.f32 %v627, %v371
        %v629 = vadd.f32 %v628, %v372
        %v630 = vadd.f32 %v629, %v373
        %v631 = vadd.f32 %v630, %v374
        %v632 = vadd.f32 %v631, %v375
        %v633 = vadd.f32 %v632, %v376
        %v634 = vadd.f32 %v633, %v377
        %v635 = vadd.f32 %v634, %v378
        %636 = vadd.xlane.f32.xlu0 %v635
        %v637 = vpop.xlane.xlu0 %636
        %v638 = vadd.f32 %v379, %v380
        %v639 = vadd.f32 %v638, %v381
        %v640 = vadd.f32 %v639, %v382
        %v641 = vadd.f32 %v640, %v383
        %v642 = vadd.f32 %v641, %v384
        %v643 = vadd.f32 %v642, %v385
        %v644 = vadd.f32 %v643, %v386
        %v645 = vadd.f32 %v644, %v387
        %v646 = vadd.f32 %v645, %v388
        %v647 = vadd.f32 %v646, %v389
        %v648 = vadd.f32 %v647, %v390
        %v649 = vadd.f32 %v648, %v391
        %v650 = vadd.f32 %v649, %v392
        %v651 = vadd.f32 %v650, %v393
        %v652 = vadd.f32 %v651, %v394
        %v653 = vadd.f32 %v652, %v395
        %v654 = vadd.f32 %v653, %v396
        %v655 = vadd.f32 %v654, %v397
        %v656 = vadd.f32 %v655, %v398
        %v657 = vadd.f32 %v656, %v399
        %v658 = vadd.f32 %v657, %v400
        %v659 = vadd.f32 %v658, %v401
        %v660 = vadd.f32 %v659, %v402
        %v661 = vadd.f32 %v660, %v403
        %v662 = vadd.f32 %v661, %v404
        %v663 = vadd.f32 %v662, %v405
        %v664 = vadd.f32 %v663, %v406
        %v665 = vadd.f32 %v664, %v407
        %v666 = vadd.f32 %v665, %v408
        %v667 = vadd.f32 %v666, %v409
        %v668 = vadd.f32 %v667, %v410
        %669 = vadd.xlane.f32.xlu0 %v668
        %v670 = vpop.xlane.xlu0 %669
        %v671 = vadd.f32 %v411, %v412
        %v672 = vadd.f32 %v671, %v413
        %v673 = vadd.f32 %v672, %v414
        %v674 = vadd.f32 %v673, %v415
        %v675 = vadd.f32 %v674, %v416
        %v676 = vadd.f32 %v675, %v417
        %v677 = vadd.f32 %v676, %v418
        %v678 = vadd.f32 %v677, %v419
        %v679 = vadd.f32 %v678, %v420
        %v680 = vadd.f32 %v679, %v421
        %v681 = vadd.f32 %v680, %v422
        %v682 = vadd.f32 %v681, %v423
        %v683 = vadd.f32 %v682, %v424
        %v684 = vadd.f32 %v683, %v425
        %v685 = vadd.f32 %v684, %v426
        %v686 = vadd.f32 %v685, %v427
        %v687 = vadd.f32 %v686, %v428
        %v688 = vadd.f32 %v687, %v429
        %v689 = vadd.f32 %v688, %v430
        %v690 = vadd.f32 %v689, %v431
        %v691 = vadd.f32 %v690, %v432
        %v692 = vadd.f32 %v691, %v433
        %v693 = vadd.f32 %v692, %v434
        %v694 = vadd.f32 %v693, %v435
        %v695 = vadd.f32 %v694, %v436
        %v696 = vadd.f32 %v695, %v437
        %v697 = vadd.f32 %v696, %v438
        %v698 = vadd.f32 %v697, %v439
        %v699 = vadd.f32 %v698, %v440
        %v700 = vadd.f32 %v699, %v441
        %v701 = vadd.f32 %v700, %v442
        %702 = vadd.xlane.f32.xlu0 %v701
        %v703 = vpop.xlane.xlu0 %702
        %v704 = vadd.f32 %v443, %v444
        %v705 = vadd.f32 %v704, %v445
        %v706 = vadd.f32 %v705, %v446
        %v707 = vadd.f32 %v706, %v447
        %v708 = vadd.f32 %v707, %v448
        %v709 = vadd.f32 %v708, %v449
        %v710 = vadd.f32 %v709, %v450
        %v711 = vadd.f32 %v710, %v451
        %v712 = vadd.f32 %v711, %v452
        %v713 = vadd.f32 %v712, %v453
        %v714 = vadd.f32 %v713, %v454
        %v715 = vadd.f32 %v714, %v455
        %v716 = vadd.f32 %v715, %v456
        %v717 = vadd.f32 %v716, %v457
        %v718 = vadd.f32 %v717, %v458
        %v719 = vadd.f32 %v718, %v459
        %v720 = vadd.f32 %v719, %v460
        %v721 = vadd.f32 %v720, %v461
        %v722 = vadd.f32 %v721, %v462
        %v723 = vadd.f32 %v722, %v463
        %v724 = vadd.f32 %v723, %v464
        %v725 = vadd.f32 %v724, %v465
        %v726 = vadd.f32 %v725, %v466
        %v727 = vadd.f32 %v726, %v467
        %v728 = vadd.f32 %v727, %v468
        %v729 = vadd.f32 %v728, %v469
        %v730 = vadd.f32 %v729, %v470
        %v731 = vadd.f32 %v730, %v471
        %v732 = vadd.f32 %v731, %v472
        %v733 = vadd.f32 %v732, %v473
        %v734 = vadd.f32 %v733, %v474
        %735 = vadd.xlane.f32.xlu0 %v734
        %v736 = vpop.xlane.xlu0 %735
        %v737 = vadd.f32 %v475, %v476
        %v738 = vadd.f32 %v737, %v477
        %v739 = vadd.f32 %v738, %v478
        %v740 = vadd.f32 %v739, %v479
        %v741 = vadd.f32 %v740, %v480
        %v742 = vadd.f32 %v741, %v481
        %v743 = vadd.f32 %v742, %v482
        %v744 = vadd.f32 %v743, %v483
        %v745 = vadd.f32 %v744, %v484
        %v746 = vadd.f32 %v745, %v485
        %v747 = vadd.f32 %v746, %v486
        %v748 = vadd.f32 %v747, %v487
        %v749 = vadd.f32 %v748, %v488
        %v750 = vadd.f32 %v749, %v489
        %v751 = vadd.f32 %v750, %v490
        %v752 = vadd.f32 %v751, %v491
        %v753 = vadd.f32 %v752, %v492
        %v754 = vadd.f32 %v753, %v493
        %v755 = vadd.f32 %v754, %v494
        %v756 = vadd.f32 %v755, %v495
        %v757 = vadd.f32 %v756, %v496
        %v758 = vadd.f32 %v757, %v497
        %v759 = vadd.f32 %v758, %v498
        %v760 = vadd.f32 %v759, %v499
        %v761 = vadd.f32 %v760, %v500
        %v762 = vadd.f32 %v761, %v501
        %v763 = vadd.f32 %v762, %v502
        %v764 = vadd.f32 %v763, %v503
        %v765 = vadd.f32 %v764, %v504
        %v766 = vadd.f32 %v765, %v505
        %v767 = vadd.f32 %v766, %v506
        %768 = vadd.xlane.f32.xlu0 %v767
        %v769 = vpop.xlane.xlu0 %768
        %v770 = vadd.f32 %v507, %v508
        %v771 = vadd.f32 %v770, %v509
        %v772 = vadd.f32 %v771, %v510
        %v773 = vadd.f32 %v772, %v511
        %v774 = vadd.f32 %v773, %v512
        %v775 = vadd.f32 %v774, %v513
        %v776 = vadd.f32 %v775, %v514
        %v777 = vadd.f32 %v776, %v515
        %v778 = vadd.f32 %v777, %v516
        %v779 = vadd.f32 %v778, %v517
        %v780 = vadd.f32 %v779, %v518
        %v781 = vadd.f32 %v780, %v519
        %v782 = vadd.f32 %v781, %v520
        %v783 = vadd.f32 %v782, %v521
        %v784 = vadd.f32 %v783, %v522
        %v785 = vadd.f32 %v784, %v523
        %v786 = vadd.f32 %v785, %v524
        %v787 = vadd.f32 %v786, %v525
        %v788 = vadd.f32 %v787, %v526
        %v789 = vadd.f32 %v788, %v527
        %v790 = vadd.f32 %v789, %v528
        %v791 = vadd.f32 %v790, %v529
        %v792 = vadd.f32 %v791, %v530
        %v793 = vadd.f32 %v792, %v531
        %v794 = vadd.f32 %v793, %v532
        %v795 = vadd.f32 %v794, %v533
        %v796 = vadd.f32 %v795, %v534
        %v797 = vadd.f32 %v796, %v535
        %v798 = vadd.f32 %v797, %v536
        %v799 = vadd.f32 %v798, %v537
        %v800 = vadd.f32 %v799, %v538
        %801 = vadd.xlane.f32.xlu0 %v800
        %v802 = vpop.xlane.xlu0 %801
        %v803 = vmul.f32 %v571, 0.00024414063
        %v804 = vmul.f32 %v604, 0.00024414063
        %v805 = vmul.f32 %v637, 0.00024414063
        %v806 = vmul.f32 %v670, 0.00024414063
        %v807 = vmul.f32 %v703, 0.00024414063
        %v808 = vmul.f32 %v736, 0.00024414063
        %v809 = vmul.f32 %v769, 0.00024414063
        %v810 = vmul.f32 %v802, 0.00024414063
        %v811 = vld [vmem:[%s1] sm:$0xff]
        %v812 = vld [vmem:[%s1 + $0x8] sm:$0xff]
        %v813 = vld [vmem:[%s1 + $0x10] sm:$0xff]
        %v814 = vld [vmem:[%s1 + $0x18] sm:$0xff]
        %v815 = vld [vmem:[%s1 + $0x20] sm:$0xff]
        %v816 = vld [vmem:[%s1 + $0x28] sm:$0xff]
        %v817 = vld [vmem:[%s1 + $0x30] sm:$0xff]
        %v818 = vld [vmem:[%s1 + $0x38] sm:$0xff]
        %v819 = vld [vmem:[#allocation5] sm:$0x1]
        %v820 = vld [vmem:[%s3] sm:$0xff]
        %v821 = vld [vmem:[%s3 + $0x8] sm:$0xff]
        %v822 = vld [vmem:[%s3 + $0x10] sm:$0xff]
        %v823 = vld [vmem:[%s3 + $0x18] sm:$0xff]
        %v824 = vld [vmem:[%s3 + $0x20] sm:$0xff]
        %v825 = vld [vmem:[%s3 + $0x28] sm:$0xff]
        %v826 = vld [vmem:[%s3 + $0x30] sm:$0xff]
        %v827 = vld [vmem:[%s3 + $0x38] sm:$0xff]
        %v828 = vld [vmem:[%s4] sm:$0xff]
        %v829 = vld [vmem:[%s4 + $0x8] sm:$0xff]
        %v830 = vld [vmem:[%s4 + $0x10] sm:$0xff]
        %v831 = vld [vmem:[%s4 + $0x18] sm:$0xff]
        %v832 = vld [vmem:[%s4 + $0x20] sm:$0xff]
        %v833 = vld [vmem:[%s4 + $0x28] sm:$0xff]
        %v834 = vld [vmem:[%s4 + $0x30] sm:$0xff]
        %v835 = vld [vmem:[%s4 + $0x38] sm:$0xff]
        %v836 = vmul.f32 %v811, %v803
        %v837 = vmul.f32 %v812, %v804
        %v838 = vmul.f32 %v813, %v805
        %v839 = vmul.f32 %v814, %v806
        %v840 = vmul.f32 %v815, %v807
        %v841 = vmul.f32 %v816, %v808
        %v842 = vmul.f32 %v817, %v809
        %v843 = vmul.f32 %v818, %v810
        %vm844 = vcmask 31744
        %v845 = vsel %vm844, %v836, 0.0
        %v846 = vsel %vm844, %v837, 0.0
        %v847 = vadd.f32 %v845, %v846
        %v848 = vsel %vm844, %v838, 0.0
        %v849 = vadd.f32 %v847, %v848
        %v850 = vsel %vm844, %v839, 0.0
        %v851 = vadd.f32 %v849, %v850
        %v852 = vsel %vm844, %v840, 0.0
        %v853 = vadd.f32 %v851, %v852
        %v854 = vsel %vm844, %v841, 0.0
        %v855 = vadd.f32 %v853, %v854
        %v856 = vsel %vm844, %v842, 0.0
        %v857 = vadd.f32 %v855, %v856
        %v858 = vsel %vm844, %v843, 0.0
        %v859 = vadd.f32 %v857, %v858
        %v860 = vrot.slane %v859, 4
        %v861 = vadd.f32 %v859, %v860
        %v862 = vrot.slane %v861, 2
        %v863 = vadd.f32 %v861, %v862
        %v864 = vrot.slane %v863, 1
        %v865 = vadd.f32 %v863, %v864
        %v866 = vadd.f32 %v865, %v819
        %v867 = vmax.f32 %v866, 0.0
        %v868 = vlaneseq
        %v869 = vshrl.u32 %v868, 7
        %v870 = vsub.s32 0, %v869
        %v871 = vrot.slane %v867, %v870
        %v872 = vmul.f32 %v820, %v871
        %v873 = vmul.f32 %v821, %v871
        %v874 = vmul.f32 %v822, %v871
        %v875 = vmul.f32 %v823, %v871
        %v876 = vmul.f32 %v824, %v871
        %v877 = vmul.f32 %v825, %v871
        %v878 = vmul.f32 %v826, %v871
        %v879 = vmul.f32 %v827, %v871
        %v880 = vsel %vm844, %v872, 0.0
        %881 = vadd.xlane.f32.xlu0 %v880
        %v882 = vpop.xlane.xlu0 %881
        %v883 = vsel %vm844, %v873, 0.0
        %884 = vadd.xlane.f32.xlu0 %v883
        %v885 = vpop.xlane.xlu0 %884
        %v886 = vsel %vm844, %v874, 0.0
        %887 = vadd.xlane.f32.xlu0 %v886
        %v888 = vpop.xlane.xlu0 %887
        %v889 = vsel %vm844, %v875, 0.0
        %890 = vadd.xlane.f32.xlu0 %v889
        %v891 = vpop.xlane.xlu0 %890
        %v892 = vsel %vm844, %v876, 0.0
        %893 = vadd.xlane.f32.xlu0 %v892
        %v894 = vpop.xlane.xlu0 %893
        %v895 = vsel %vm844, %v877, 0.0
        %896 = vadd.xlane.f32.xlu0 %v895
        %v897 = vpop.xlane.xlu0 %896
        %v898 = vsel %vm844, %v878, 0.0
        %899 = vadd.xlane.f32.xlu0 %v898
        %v900 = vpop.xlane.xlu0 %899
        %v901 = vsel %vm844, %v879, 0.0
        %902 = vadd.xlane.f32.xlu0 %v901
        %v903 = vpop.xlane.xlu0 %902
        %v904 = vadd.f32 %v882, %v828
        %v905 = vadd.f32 %v885, %v829
        %v906 = vadd.f32 %v888, %v830
        %v907 = vadd.f32 %v891, %v831
        %v908 = vadd.f32 %v894, %v832
        %v909 = vadd.f32 %v897, %v833
        %v910 = vadd.f32 %v900, %v834
        %v911 = vadd.f32 %v903, %v835
        %v912 = vxor.u32 %v904, 2147483648
        %v913 = vxor.u32 %v905, 2147483648
        %v914 = vxor.u32 %v906, 2147483648
        %v915 = vxor.u32 %v907, 2147483648
        %v916 = vxor.u32 %v908, 2147483648
        %v917 = vxor.u32 %v909, 2147483648
        %v918 = vxor.u32 %v910, 2147483648
        %v919 = vxor.u32 %v911, 2147483648
        %v920 = vmul.f32 %v912, 1.442695
        %v921 = vpow.pop %v920
        %v922 = vmul.f32 %v913, 1.442695
        %v923 = vpow.pop %v922
        %v924 = vmul.f32 %v914, 1.442695
        %v925 = vpow.pop %v924
        %v926 = vmul.f32 %v915, 1.442695
        %v927 = vpow.pop %v926
        %v928 = vmul.f32 %v916, 1.442695
        %v929 = vpow.pop %v928
        %v930 = vmul.f32 %v917, 1.442695
        %v931 = vpow.pop %v930
        %v932 = vmul.f32 %v918, 1.442695
        %v933 = vpow.pop %v932
        %v934 = vmul.f32 %v919, 1.442695
        %v935 = vpow.pop %v934
        %v936 = vadd.f32 %v921, 1.0
        %v937 = vadd.f32 %v923, 1.0
        %v938 = vadd.f32 %v925, 1.0
        %v939 = vadd.f32 %v927, 1.0
        %v940 = vadd.f32 %v929, 1.0
        %v941 = vadd.f32 %v931, 1.0
        %v942 = vadd.f32 %v933, 1.0
        %v943 = vadd.f32 %v935, 1.0
        %v944 = vrcp.pop %v936
        %v945 = vmul.f32 1.0, %v944
        %v946 = vrcp.pop %v937
        %v947 = vmul.f32 1.0, %v946
        %v948 = vrcp.pop %v938
        %v949 = vmul.f32 1.0, %v948
        %v950 = vrcp.pop %v939
        %v951 = vmul.f32 1.0, %v950
        %v952 = vrcp.pop %v940
        %v953 = vmul.f32 1.0, %v952
        %v954 = vrcp.pop %v941
        %v955 = vmul.f32 1.0, %v954
        %v956 = vrcp.pop %v942
        %v957 = vmul.f32 1.0, %v956
        %v958 = vrcp.pop %v943
        %v959 = vmul.f32 1.0, %v958
        %v960 = vld [vmem:[%s5] sm:$0xff]
        %v961 = vld [vmem:[%s5 + $0x8] sm:$0xff]
        %v962 = vld [vmem:[%s5 + $0x10] sm:$0xff]
        %v963 = vld [vmem:[%s5 + $0x18] sm:$0xff]
        %v964 = vld [vmem:[%s5 + $0x20] sm:$0xff]
        %v965 = vld [vmem:[%s5 + $0x28] sm:$0xff]
        %v966 = vld [vmem:[%s5 + $0x30] sm:$0xff]
        %v967 = vld [vmem:[%s5 + $0x38] sm:$0xff]
        %v968 = vld [vmem:[%s5] sm:$0x1]
        %970 = vset.pattern.permute.xlu0 0
        %971 = vperm.xlu0 %970, %v960
        %v972 = vpop.permute.xlu0 %971
        %975 = vset.pattern.permute.xlu0 0
        %976 = vperm.xlu0 %975, %v961
        %v977 = vpop.permute.xlu0 %976
        %980 = vset.pattern.permute.xlu0 0
        %981 = vperm.xlu0 %980, %v962
        %v982 = vpop.permute.xlu0 %981
        %985 = vset.pattern.permute.xlu0 0
        %986 = vperm.xlu0 %985, %v963
        %v987 = vpop.permute.xlu0 %986
        %990 = vset.pattern.permute.xlu0 0
        %991 = vperm.xlu0 %990, %v964
        %v992 = vpop.permute.xlu0 %991
        %995 = vset.pattern.permute.xlu0 0
        %996 = vperm.xlu0 %995, %v965
        %v997 = vpop.permute.xlu0 %996
        %1000 = vset.pattern.permute.xlu0 0
        %1001 = vperm.xlu0 %1000, %v966
        %v1002 = vpop.permute.xlu0 %1001
        %1005 = vset.pattern.permute.xlu0 0
        %1006 = vperm.xlu0 %1005, %v967
        %v1007 = vpop.permute.xlu0 %1006
        %v1009 = vmul.f32 %v283, %v972
        %v1010 = vmul.f32 %v284, %v972
        %v1011 = vmul.f32 %v285, %v972
        %v1012 = vmul.f32 %v286, %v972
        %v1013 = vmul.f32 %v287, %v972
        %v1014 = vmul.f32 %v288, %v972
        %v1015 = vmul.f32 %v289, %v972
        %v1016 = vmul.f32 %v290, %v972
        %v1017 = vmul.f32 %v291, %v972
        %v1018 = vmul.f32 %v292, %v972
        %v1019 = vmul.f32 %v293, %v972
        %v1020 = vmul.f32 %v294, %v972
        %v1021 = vmul.f32 %v295, %v972
        %v1022 = vmul.f32 %v296, %v972
        %v1023 = vmul.f32 %v297, %v972
        %v1024 = vmul.f32 %v298, %v972
        %v1025 = vmul.f32 %v299, %v972
        %v1026 = vmul.f32 %v300, %v972
        %v1027 = vmul.f32 %v301, %v972
        %v1028 = vmul.f32 %v302, %v972
        %v1029 = vmul.f32 %v303, %v972
        %v1030 = vmul.f32 %v304, %v972
        %v1031 = vmul.f32 %v305, %v972
        %v1032 = vmul.f32 %v306, %v972
        %v1033 = vmul.f32 %v307, %v972
        %v1034 = vmul.f32 %v308, %v972
        %v1035 = vmul.f32 %v309, %v972
        %v1036 = vmul.f32 %v310, %v972
        %v1037 = vmul.f32 %v311, %v972
        %v1038 = vmul.f32 %v312, %v972
        %v1039 = vmul.f32 %v313, %v972
        %v1040 = vmul.f32 %v314, %v972
        %v1041 = vmul.f32 %v315, %v977
        %v1042 = vmul.f32 %v316, %v977
        %v1043 = vmul.f32 %v317, %v977
        %v1044 = vmul.f32 %v318, %v977
        %v1045 = vmul.f32 %v319, %v977
        %v1046 = vmul.f32 %v320, %v977
        %v1047 = vmul.f32 %v321, %v977
        %v1048 = vmul.f32 %v322, %v977
        %v1049 = vmul.f32 %v323, %v977
        %v1050 = vmul.f32 %v324, %v977
        %v1051 = vmul.f32 %v325, %v977
        %v1052 = vmul.f32 %v326, %v977
        %v1053 = vmul.f32 %v327, %v977
        %v1054 = vmul.f32 %v328, %v977
        %v1055 = vmul.f32 %v329, %v977
        %v1056 = vmul.f32 %v330, %v977
        %v1057 = vmul.f32 %v331, %v977
        %v1058 = vmul.f32 %v332, %v977
        %v1059 = vmul.f32 %v333, %v977
        %v1060 = vmul.f32 %v334, %v977
        %v1061 = vmul.f32 %v335, %v977
        %v1062 = vmul.f32 %v336, %v977
        %v1063 = vmul.f32 %v337, %v977
        %v1064 = vmul.f32 %v338, %v977
        %v1065 = vmul.f32 %v339, %v977
        %v1066 = vmul.f32 %v340, %v977
        %v1067 = vmul.f32 %v341, %v977
        %v1068 = vmul.f32 %v342, %v977
        %v1069 = vmul.f32 %v343, %v977
        %v1070 = vmul.f32 %v344, %v977
        %v1071 = vmul.f32 %v345, %v977
        %v1072 = vmul.f32 %v346, %v977
        %v1073 = vmul.f32 %v347, %v982
        %v1074 = vmul.f32 %v348, %v982
        %v1075 = vmul.f32 %v349, %v982
        %v1076 = vmul.f32 %v350, %v982
        %v1077 = vmul.f32 %v351, %v982
        %v1078 = vmul.f32 %v352, %v982
        %v1079 = vmul.f32 %v353, %v982
        %v1080 = vmul.f32 %v354, %v982
        %v1081 = vmul.f32 %v355, %v982
        %v1082 = vmul.f32 %v356, %v982
        %v1083 = vmul.f32 %v357, %v982
        %v1084 = vmul.f32 %v358, %v982
        %v1085 = vmul.f32 %v359, %v982
        %v1086 = vmul.f32 %v360, %v982
        %v1087 = vmul.f32 %v361, %v982
        %v1088 = vmul.f32 %v362, %v982
        %v1089 = vmul.f32 %v363, %v982
        %v1090 = vmul.f32 %v364, %v982
        %v1091 = vmul.f32 %v365, %v982
        %v1092 = vmul.f32 %v366, %v982
        %v1093 = vmul.f32 %v367, %v982
        %v1094 = vmul.f32 %v368, %v982
        %v1095 = vmul.f32 %v369, %v982
        %v1096 = vmul.f32 %v370, %v982
        %v1097 = vmul.f32 %v371, %v982
        %v1098 = vmul.f32 %v372, %v982
        %v1099 = vmul.f32 %v373, %v982
        %v1100 = vmul.f32 %v374, %v982
        %v1101 = vmul.f32 %v375, %v982
        %v1102 = vmul.f32 %v376, %v982
        %v1103 = vmul.f32 %v377, %v982
        %v1104 = vmul.f32 %v378, %v982
        %v1105 = vmul.f32 %v379, %v987
        %v1106 = vmul.f32 %v380, %v987
        %v1107 = vmul.f32 %v381, %v987
        %v1108 = vmul.f32 %v382, %v987
        %v1109 = vmul.f32 %v383, %v987
        %v1110 = vmul.f32 %v384, %v987
        %v1111 = vmul.f32 %v385, %v987
        %v1112 = vmul.f32 %v386, %v987
        %v1113 = vmul.f32 %v387, %v987
        %v1114 = vmul.f32 %v388, %v987
        %v1115 = vmul.f32 %v389, %v987
        %v1116 = vmul.f32 %v390, %v987
        %v1117 = vmul.f32 %v391, %v987
        %v1118 = vmul.f32 %v392, %v987
        %v1119 = vmul.f32 %v393, %v987
        %v1120 = vmul.f32 %v394, %v987
        %v1121 = vmul.f32 %v395, %v987
        %v1122 = vmul.f32 %v396, %v987
        %v1123 = vmul.f32 %v397, %v987
        %v1124 = vmul.f32 %v398, %v987
        %v1125 = vmul.f32 %v399, %v987
        %v1126 = vmul.f32 %v400, %v987
        %v1127 = vmul.f32 %v401, %v987
        %v1128 = vmul.f32 %v402, %v987
        %v1129 = vmul.f32 %v403, %v987
        %v1130 = vmul.f32 %v404, %v987
        %v1131 = vmul.f32 %v405, %v987
        %v1132 = vmul.f32 %v406, %v987
        %v1133 = vmul.f32 %v407, %v987
        %v1134 = vmul.f32 %v408, %v987
        %v1135 = vmul.f32 %v409, %v987
        %v1136 = vmul.f32 %v410, %v987
        %v1137 = vmul.f32 %v411, %v992
        %v1138 = vmul.f32 %v412, %v992
        %v1139 = vmul.f32 %v413, %v992
        %v1140 = vmul.f32 %v414, %v992
        %v1141 = vmul.f32 %v415, %v992
        %v1142 = vmul.f32 %v416, %v992
        %v1143 = vmul.f32 %v417, %v992
        %v1144 = vmul.f32 %v418, %v992
        %v1145 = vmul.f32 %v419, %v992
        %v1146 = vmul.f32 %v420, %v992
        %v1147 = vmul.f32 %v421, %v992
        %v1148 = vmul.f32 %v422, %v992
        %v1149 = vmul.f32 %v423, %v992
        %v1150 = vmul.f32 %v424, %v992
        %v1151 = vmul.f32 %v425, %v992
        %v1152 = vmul.f32 %v426, %v992
        %v1153 = vmul.f32 %v427, %v992
        %v1154 = vmul.f32 %v428, %v992
        %v1155 = vmul.f32 %v429, %v992
        %v1156 = vmul.f32 %v430, %v992
        %v1157 = vmul.f32 %v431, %v992
        %v1158 = vmul.f32 %v432, %v992
        %v1159 = vmul.f32 %v433, %v992
        %v1160 = vmul.f32 %v434, %v992
        %v1161 = vmul.f32 %v435, %v992
        %v1162 = vmul.f32 %v436, %v992
        %v1163 = vmul.f32 %v437, %v992
        %v1164 = vmul.f32 %v438, %v992
        %v1165 = vmul.f32 %v439, %v992
        %v1166 = vmul.f32 %v440, %v992
        %v1167 = vmul.f32 %v441, %v992
        %v1168 = vmul.f32 %v442, %v992
        %v1169 = vmul.f32 %v443, %v997
        %v1170 = vmul.f32 %v444, %v997
        %v1171 = vmul.f32 %v445, %v997
        %v1172 = vmul.f32 %v446, %v997
        %v1173 = vmul.f32 %v447, %v997
        %v1174 = vmul.f32 %v448, %v997
        %v1175 = vmul.f32 %v449, %v997
        %v1176 = vmul.f32 %v450, %v997
        %v1177 = vmul.f32 %v451, %v997
        %v1178 = vmul.f32 %v452, %v997
        %v1179 = vmul.f32 %v453, %v997
        %v1180 = vmul.f32 %v454, %v997
        %v1181 = vmul.f32 %v455, %v997
        %v1182 = vmul.f32 %v456, %v997
        %v1183 = vmul.f32 %v457, %v997
        %v1184 = vmul.f32 %v458, %v997
        %v1185 = vmul.f32 %v459, %v997
        %v1186 = vmul.f32 %v460, %v997
        %v1187 = vmul.f32 %v461, %v997
        %v1188 = vmul.f32 %v462, %v997
        %v1189 = vmul.f32 %v463, %v997
        %v1190 = vmul.f32 %v464, %v997
        %v1191 = vmul.f32 %v465, %v997
        %v1192 = vmul.f32 %v466, %v997
        %v1193 = vmul.f32 %v467, %v997
        %v1194 = vmul.f32 %v468, %v997
        %v1195 = vmul.f32 %v469, %v997
        %v1196 = vmul.f32 %v470, %v997
        %v1197 = vmul.f32 %v471, %v997
        %v1198 = vmul.f32 %v472, %v997
        %v1199 = vmul.f32 %v473, %v997
        %v1200 = vmul.f32 %v474, %v997
        %v1201 = vmul.f32 %v475, %v1002
        %v1202 = vmul.f32 %v476, %v1002
        %v1203 = vmul.f32 %v477, %v1002
        %v1204 = vmul.f32 %v478, %v1002
        %v1205 = vmul.f32 %v479, %v1002
        %v1206 = vmul.f32 %v480, %v1002
        %v1207 = vmul.f32 %v481, %v1002
        %v1208 = vmul.f32 %v482, %v1002
        %v1209 = vmul.f32 %v483, %v1002
        %v1210 = vmul.f32 %v484, %v1002
        %v1211 = vmul.f32 %v485, %v1002
        %v1212 = vmul.f32 %v486, %v1002
        %v1213 = vmul.f32 %v487, %v1002
        %v1214 = vmul.f32 %v488, %v1002
        %v1215 = vmul.f32 %v489, %v1002
        %v1216 = vmul.f32 %v490, %v1002
        %v1217 = vmul.f32 %v491, %v1002
        %v1218 = vmul.f32 %v492, %v1002
        %v1219 = vmul.f32 %v493, %v1002
        %v1220 = vmul.f32 %v494, %v1002
        %v1221 = vmul.f32 %v495, %v1002
        %v1222 = vmul.f32 %v496, %v1002
        %v1223 = vmul.f32 %v497, %v1002
        %v1224 = vmul.f32 %v498, %v1002
        %v1225 = vmul.f32 %v499, %v1002
        %v1226 = vmul.f32 %v500, %v1002
        %v1227 = vmul.f32 %v501, %v1002
        %v1228 = vmul.f32 %v502, %v1002
        %v1229 = vmul.f32 %v503, %v1002
        %v1230 = vmul.f32 %v504, %v1002
        %v1231 = vmul.f32 %v505, %v1002
        %v1232 = vmul.f32 %v506, %v1002
        %v1233 = vmul.f32 %v507, %v1007
        %v1234 = vmul.f32 %v508, %v1007
        %v1235 = vmul.f32 %v509, %v1007
        %v1236 = vmul.f32 %v510, %v1007
        %v1237 = vmul.f32 %v511, %v1007
        %v1238 = vmul.f32 %v512, %v1007
        %v1239 = vmul.f32 %v513, %v1007
        %v1240 = vmul.f32 %v514, %v1007
        %v1241 = vmul.f32 %v515, %v1007
        %v1242 = vmul.f32 %v516, %v1007
        %v1243 = vmul.f32 %v517, %v1007
        %v1244 = vmul.f32 %v518, %v1007
        %v1245 = vmul.f32 %v519, %v1007
        %v1246 = vmul.f32 %v520, %v1007
        %v1247 = vmul.f32 %v521, %v1007
        %v1248 = vmul.f32 %v522, %v1007
        %v1249 = vmul.f32 %v523, %v1007
        %v1250 = vmul.f32 %v524, %v1007
        %v1251 = vmul.f32 %v525, %v1007
        %v1252 = vmul.f32 %v526, %v1007
        %v1253 = vmul.f32 %v527, %v1007
        %v1254 = vmul.f32 %v528, %v1007
        %v1255 = vmul.f32 %v529, %v1007
        %v1256 = vmul.f32 %v530, %v1007
        %v1257 = vmul.f32 %v531, %v1007
        %v1258 = vmul.f32 %v532, %v1007
        %v1259 = vmul.f32 %v533, %v1007
        %v1260 = vmul.f32 %v534, %v1007
        %v1261 = vmul.f32 %v535, %v1007
        %v1262 = vmul.f32 %v536, %v1007
        %v1263 = vmul.f32 %v537, %v1007
        %v1264 = vmul.f32 %v538, %v1007
        %v1265 = vadd.f32 %v1009, %v1041
        %v1266 = vadd.f32 %v1265, %v1073
        %v1267 = vadd.f32 %v1266, %v1105
        %v1268 = vadd.f32 %v1267, %v1137
        %v1269 = vadd.f32 %v1268, %v1169
        %v1270 = vadd.f32 %v1269, %v1201
        %v1271 = vadd.f32 %v1270, %v1233
        %v1272 = vrot.slane %v1271, 4
        %v1273 = vadd.f32 %v1271, %v1272
        %v1274 = vrot.slane %v1273, 2
        %v1275 = vadd.f32 %v1273, %v1274
        %v1276 = vrot.slane %v1275, 1
        %v1277 = vadd.f32 %v1275, %v1276
        %v1278 = vadd.f32 %v1010, %v1042
        %v1279 = vadd.f32 %v1278, %v1074
        %v1280 = vadd.f32 %v1279, %v1106
        %v1281 = vadd.f32 %v1280, %v1138
        %v1282 = vadd.f32 %v1281, %v1170
        %v1283 = vadd.f32 %v1282, %v1202
        %v1284 = vadd.f32 %v1283, %v1234
        %v1285 = vrot.slane %v1284, 4
        %v1286 = vadd.f32 %v1284, %v1285
        %v1287 = vrot.slane %v1286, 2
        %v1288 = vadd.f32 %v1286, %v1287
        %v1289 = vrot.slane %v1288, 1
        %v1290 = vadd.f32 %v1288, %v1289
        %v1291 = vadd.f32 %v1011, %v1043
        %v1292 = vadd.f32 %v1291, %v1075
        %v1293 = vadd.f32 %v1292, %v1107
        %v1294 = vadd.f32 %v1293, %v1139
        %v1295 = vadd.f32 %v1294, %v1171
        %v1296 = vadd.f32 %v1295, %v1203
        %v1297 = vadd.f32 %v1296, %v1235
        %v1298 = vrot.slane %v1297, 4
        %v1299 = vadd.f32 %v1297, %v1298
        %v1300 = vrot.slane %v1299, 2
        %v1301 = vadd.f32 %v1299, %v1300
        %v1302 = vrot.slane %v1301, 1
        %v1303 = vadd.f32 %v1301, %v1302
        %v1304 = vadd.f32 %v1012, %v1044
        %v1305 = vadd.f32 %v1304, %v1076
        %v1306 = vadd.f32 %v1305, %v1108
        %v1307 = vadd.f32 %v1306, %v1140
        %v1308 = vadd.f32 %v1307, %v1172
        %v1309 = vadd.f32 %v1308, %v1204
        %v1310 = vadd.f32 %v1309, %v1236
        %v1311 = vrot.slane %v1310, 4
        %v1312 = vadd.f32 %v1310, %v1311
        %v1313 = vrot.slane %v1312, 2
        %v1314 = vadd.f32 %v1312, %v1313
        %v1315 = vrot.slane %v1314, 1
        %v1316 = vadd.f32 %v1314, %v1315
        %v1317 = vadd.f32 %v1013, %v1045
        %v1318 = vadd.f32 %v1317, %v1077
        %v1319 = vadd.f32 %v1318, %v1109
        %v1320 = vadd.f32 %v1319, %v1141
        %v1321 = vadd.f32 %v1320, %v1173
        %v1322 = vadd.f32 %v1321, %v1205
        %v1323 = vadd.f32 %v1322, %v1237
        %v1324 = vrot.slane %v1323, 4
        %v1325 = vadd.f32 %v1323, %v1324
        %v1326 = vrot.slane %v1325, 2
        %v1327 = vadd.f32 %v1325, %v1326
        %v1328 = vrot.slane %v1327, 1
        %v1329 = vadd.f32 %v1327, %v1328
        %v1330 = vadd.f32 %v1014, %v1046
        %v1331 = vadd.f32 %v1330, %v1078
        %v1332 = vadd.f32 %v1331, %v1110
        %v1333 = vadd.f32 %v1332, %v1142
        %v1334 = vadd.f32 %v1333, %v1174
        %v1335 = vadd.f32 %v1334, %v1206
        %v1336 = vadd.f32 %v1335, %v1238
        %v1337 = vrot.slane %v1336, 4
        %v1338 = vadd.f32 %v1336, %v1337
        %v1339 = vrot.slane %v1338, 2
        %v1340 = vadd.f32 %v1338, %v1339
        %v1341 = vrot.slane %v1340, 1
        %v1342 = vadd.f32 %v1340, %v1341
        %v1343 = vadd.f32 %v1015, %v1047
        %v1344 = vadd.f32 %v1343, %v1079
        %v1345 = vadd.f32 %v1344, %v1111
        %v1346 = vadd.f32 %v1345, %v1143
        %v1347 = vadd.f32 %v1346, %v1175
        %v1348 = vadd.f32 %v1347, %v1207
        %v1349 = vadd.f32 %v1348, %v1239
        %v1350 = vrot.slane %v1349, 4
        %v1351 = vadd.f32 %v1349, %v1350
        %v1352 = vrot.slane %v1351, 2
        %v1353 = vadd.f32 %v1351, %v1352
        %v1354 = vrot.slane %v1353, 1
        %v1355 = vadd.f32 %v1353, %v1354
        %v1356 = vadd.f32 %v1016, %v1048
        %v1357 = vadd.f32 %v1356, %v1080
        %v1358 = vadd.f32 %v1357, %v1112
        %v1359 = vadd.f32 %v1358, %v1144
        %v1360 = vadd.f32 %v1359, %v1176
        %v1361 = vadd.f32 %v1360, %v1208
        %v1362 = vadd.f32 %v1361, %v1240
        %v1363 = vrot.slane %v1362, 4
        %v1364 = vadd.f32 %v1362, %v1363
        %v1365 = vrot.slane %v1364, 2
        %v1366 = vadd.f32 %v1364, %v1365
        %v1367 = vrot.slane %v1366, 1
        %v1368 = vadd.f32 %v1366, %v1367
        %v1369 = vadd.f32 %v1017, %v1049
        %v1370 = vadd.f32 %v1369, %v1081
        %v1371 = vadd.f32 %v1370, %v1113
        %v1372 = vadd.f32 %v1371, %v1145
        %v1373 = vadd.f32 %v1372, %v1177
        %v1374 = vadd.f32 %v1373, %v1209
        %v1375 = vadd.f32 %v1374, %v1241
        %v1376 = vrot.slane %v1375, 4
        %v1377 = vadd.f32 %v1375, %v1376
        %v1378 = vrot.slane %v1377, 2
        %v1379 = vadd.f32 %v1377, %v1378
        %v1380 = vrot.slane %v1379, 1
        %v1381 = vadd.f32 %v1379, %v1380
        %v1382 = vadd.f32 %v1018, %v1050
        %v1383 = vadd.f32 %v1382, %v1082
        %v1384 = vadd.f32 %v1383, %v1114
        %v1385 = vadd.f32 %v1384, %v1146
        %v1386 = vadd.f32 %v1385, %v1178
        %v1387 = vadd.f32 %v1386, %v1210
        %v1388 = vadd.f32 %v1387, %v1242
        %v1389 = vrot.slane %v1388, 4
        %v1390 = vadd.f32 %v1388, %v1389
        %v1391 = vrot.slane %v1390, 2
        %v1392 = vadd.f32 %v1390, %v1391
        %v1393 = vrot.slane %v1392, 1
        %v1394 = vadd.f32 %v1392, %v1393
        %v1395 = vadd.f32 %v1019, %v1051
        %v1396 = vadd.f32 %v1395, %v1083
        %v1397 = vadd.f32 %v1396, %v1115
        %v1398 = vadd.f32 %v1397, %v1147
        %v1399 = vadd.f32 %v1398, %v1179
        %v1400 = vadd.f32 %v1399, %v1211
        %v1401 = vadd.f32 %v1400, %v1243
        %v1402 = vrot.slane %v1401, 4
        %v1403 = vadd.f32 %v1401, %v1402
        %v1404 = vrot.slane %v1403, 2
        %v1405 = vadd.f32 %v1403, %v1404
        %v1406 = vrot.slane %v1405, 1
        %v1407 = vadd.f32 %v1405, %v1406
        %v1408 = vadd.f32 %v1020, %v1052
        %v1409 = vadd.f32 %v1408, %v1084
        %v1410 = vadd.f32 %v1409, %v1116
        %v1411 = vadd.f32 %v1410, %v1148
        %v1412 = vadd.f32 %v1411, %v1180
        %v1413 = vadd.f32 %v1412, %v1212
        %v1414 = vadd.f32 %v1413, %v1244
        %v1415 = vrot.slane %v1414, 4
        %v1416 = vadd.f32 %v1414, %v1415
        %v1417 = vrot.slane %v1416, 2
        %v1418 = vadd.f32 %v1416, %v1417
        %v1419 = vrot.slane %v1418, 1
        %v1420 = vadd.f32 %v1418, %v1419
        %v1421 = vadd.f32 %v1021, %v1053
        %v1422 = vadd.f32 %v1421, %v1085
        %v1423 = vadd.f32 %v1422, %v1117
        %v1424 = vadd.f32 %v1423, %v1149
        %v1425 = vadd.f32 %v1424, %v1181
        %v1426 = vadd.f32 %v1425, %v1213
        %v1427 = vadd.f32 %v1426, %v1245
        %v1428 = vrot.slane %v1427, 4
        %v1429 = vadd.f32 %v1427, %v1428
        %v1430 = vrot.slane %v1429, 2
        %v1431 = vadd.f32 %v1429, %v1430
        %v1432 = vrot.slane %v1431, 1
        %v1433 = vadd.f32 %v1431, %v1432
        %v1434 = vadd.f32 %v1022, %v1054
        %v1435 = vadd.f32 %v1434, %v1086
        %v1436 = vadd.f32 %v1435, %v1118
        %v1437 = vadd.f32 %v1436, %v1150
        %v1438 = vadd.f32 %v1437, %v1182
        %v1439 = vadd.f32 %v1438, %v1214
        %v1440 = vadd.f32 %v1439, %v1246
        %v1441 = vrot.slane %v1440, 4
        %v1442 = vadd.f32 %v1440, %v1441
        %v1443 = vrot.slane %v1442, 2
        %v1444 = vadd.f32 %v1442, %v1443
        %v1445 = vrot.slane %v1444, 1
        %v1446 = vadd.f32 %v1444, %v1445
        %v1447 = vadd.f32 %v1023, %v1055
        %v1448 = vadd.f32 %v1447, %v1087
        %v1449 = vadd.f32 %v1448, %v1119
        %v1450 = vadd.f32 %v1449, %v1151
        %v1451 = vadd.f32 %v1450, %v1183
        %v1452 = vadd.f32 %v1451, %v1215
        %v1453 = vadd.f32 %v1452, %v1247
        %v1454 = vrot.slane %v1453, 4
        %v1455 = vadd.f32 %v1453, %v1454
        %v1456 = vrot.slane %v1455, 2
        %v1457 = vadd.f32 %v1455, %v1456
        %v1458 = vrot.slane %v1457, 1
        %v1459 = vadd.f32 %v1457, %v1458
        %v1460 = vadd.f32 %v1024, %v1056
        %v1461 = vadd.f32 %v1460, %v1088
        %v1462 = vadd.f32 %v1461, %v1120
        %v1463 = vadd.f32 %v1462, %v1152
        %v1464 = vadd.f32 %v1463, %v1184
        %v1465 = vadd.f32 %v1464, %v1216
        %v1466 = vadd.f32 %v1465, %v1248
        %v1467 = vrot.slane %v1466, 4
        %v1468 = vadd.f32 %v1466, %v1467
        %v1469 = vrot.slane %v1468, 2
        %v1470 = vadd.f32 %v1468, %v1469
        %v1471 = vrot.slane %v1470, 1
        %v1472 = vadd.f32 %v1470, %v1471
        %v1473 = vadd.f32 %v1025, %v1057
        %v1474 = vadd.f32 %v1473, %v1089
        %v1475 = vadd.f32 %v1474, %v1121
        %v1476 = vadd.f32 %v1475, %v1153
        %v1477 = vadd.f32 %v1476, %v1185
        %v1478 = vadd.f32 %v1477, %v1217
        %v1479 = vadd.f32 %v1478, %v1249
        %v1480 = vrot.slane %v1479, 4
        %v1481 = vadd.f32 %v1479, %v1480
        %v1482 = vrot.slane %v1481, 2
        %v1483 = vadd.f32 %v1481, %v1482
        %v1484 = vrot.slane %v1483, 1
        %v1485 = vadd.f32 %v1483, %v1484
        %v1486 = vadd.f32 %v1026, %v1058
        %v1487 = vadd.f32 %v1486, %v1090
        %v1488 = vadd.f32 %v1487, %v1122
        %v1489 = vadd.f32 %v1488, %v1154
        %v1490 = vadd.f32 %v1489, %v1186
        %v1491 = vadd.f32 %v1490, %v1218
        %v1492 = vadd.f32 %v1491, %v1250
        %v1493 = vrot.slane %v1492, 4
        %v1494 = vadd.f32 %v1492, %v1493
        %v1495 = vrot.slane %v1494, 2
        %v1496 = vadd.f32 %v1494, %v1495
        %v1497 = vrot.slane %v1496, 1
        %v1498 = vadd.f32 %v1496, %v1497
        %v1499 = vadd.f32 %v1027, %v1059
        %v1500 = vadd.f32 %v1499, %v1091
        %v1501 = vadd.f32 %v1500, %v1123
        %v1502 = vadd.f32 %v1501, %v1155
        %v1503 = vadd.f32 %v1502, %v1187
        %v1504 = vadd.f32 %v1503, %v1219
        %v1505 = vadd.f32 %v1504, %v1251
        %v1506 = vrot.slane %v1505, 4
        %v1507 = vadd.f32 %v1505, %v1506
        %v1508 = vrot.slane %v1507, 2
        %v1509 = vadd.f32 %v1507, %v1508
        %v1510 = vrot.slane %v1509, 1
        %v1511 = vadd.f32 %v1509, %v1510
        %v1512 = vadd.f32 %v1028, %v1060
        %v1513 = vadd.f32 %v1512, %v1092
        %v1514 = vadd.f32 %v1513, %v1124
        %v1515 = vadd.f32 %v1514, %v1156
        %v1516 = vadd.f32 %v1515, %v1188
        %v1517 = vadd.f32 %v1516, %v1220
        %v1518 = vadd.f32 %v1517, %v1252
        %v1519 = vrot.slane %v1518, 4
        %v1520 = vadd.f32 %v1518, %v1519
        %v1521 = vrot.slane %v1520, 2
        %v1522 = vadd.f32 %v1520, %v1521
        %v1523 = vrot.slane %v1522, 1
        %v1524 = vadd.f32 %v1522, %v1523
        %v1525 = vadd.f32 %v1029, %v1061
        %v1526 = vadd.f32 %v1525, %v1093
        %v1527 = vadd.f32 %v1526, %v1125
        %v1528 = vadd.f32 %v1527, %v1157
        %v1529 = vadd.f32 %v1528, %v1189
        %v1530 = vadd.f32 %v1529, %v1221
        %v1531 = vadd.f32 %v1530, %v1253
        %v1532 = vrot.slane %v1531, 4
        %v1533 = vadd.f32 %v1531, %v1532
        %v1534 = vrot.slane %v1533, 2
        %v1535 = vadd.f32 %v1533, %v1534
        %v1536 = vrot.slane %v1535, 1
        %v1537 = vadd.f32 %v1535, %v1536
        %v1538 = vadd.f32 %v1030, %v1062
        %v1539 = vadd.f32 %v1538, %v1094
        %v1540 = vadd.f32 %v1539, %v1126
        %v1541 = vadd.f32 %v1540, %v1158
        %v1542 = vadd.f32 %v1541, %v1190
        %v1543 = vadd.f32 %v1542, %v1222
        %v1544 = vadd.f32 %v1543, %v1254
        %v1545 = vrot.slane %v1544, 4
        %v1546 = vadd.f32 %v1544, %v1545
        %v1547 = vrot.slane %v1546, 2
        %v1548 = vadd.f32 %v1546, %v1547
        %v1549 = vrot.slane %v1548, 1
        %v1550 = vadd.f32 %v1548, %v1549
        %v1551 = vadd.f32 %v1031, %v1063
        %v1552 = vadd.f32 %v1551, %v1095
        %v1553 = vadd.f32 %v1552, %v1127
        %v1554 = vadd.f32 %v1553, %v1159
        %v1555 = vadd.f32 %v1554, %v1191
        %v1556 = vadd.f32 %v1555, %v1223
        %v1557 = vadd.f32 %v1556, %v1255
        %v1558 = vrot.slane %v1557, 4
        %v1559 = vadd.f32 %v1557, %v1558
        %v1560 = vrot.slane %v1559, 2
        %v1561 = vadd.f32 %v1559, %v1560
        %v1562 = vrot.slane %v1561, 1
        %v1563 = vadd.f32 %v1561, %v1562
        %v1564 = vadd.f32 %v1032, %v1064
        %v1565 = vadd.f32 %v1564, %v1096
        %v1566 = vadd.f32 %v1565, %v1128
        %v1567 = vadd.f32 %v1566, %v1160
        %v1568 = vadd.f32 %v1567, %v1192
        %v1569 = vadd.f32 %v1568, %v1224
        %v1570 = vadd.f32 %v1569, %v1256
        %v1571 = vrot.slane %v1570, 4
        %v1572 = vadd.f32 %v1570, %v1571
        %v1573 = vrot.slane %v1572, 2
        %v1574 = vadd.f32 %v1572, %v1573
        %v1575 = vrot.slane %v1574, 1
        %v1576 = vadd.f32 %v1574, %v1575
        %v1577 = vadd.f32 %v1033, %v1065
        %v1578 = vadd.f32 %v1577, %v1097
        %v1579 = vadd.f32 %v1578, %v1129
        %v1580 = vadd.f32 %v1579, %v1161
        %v1581 = vadd.f32 %v1580, %v1193
        %v1582 = vadd.f32 %v1581, %v1225
        %v1583 = vadd.f32 %v1582, %v1257
        %v1584 = vrot.slane %v1583, 4
        %v1585 = vadd.f32 %v1583, %v1584
        %v1586 = vrot.slane %v1585, 2
        %v1587 = vadd.f32 %v1585, %v1586
        %v1588 = vrot.slane %v1587, 1
        %v1589 = vadd.f32 %v1587, %v1588
        %v1590 = vadd.f32 %v1034, %v1066
        %v1591 = vadd.f32 %v1590, %v1098
        %v1592 = vadd.f32 %v1591, %v1130
        %v1593 = vadd.f32 %v1592, %v1162
        %v1594 = vadd.f32 %v1593, %v1194
        %v1595 = vadd.f32 %v1594, %v1226
        %v1596 = vadd.f32 %v1595, %v1258
        %v1597 = vrot.slane %v1596, 4
        %v1598 = vadd.f32 %v1596, %v1597
        %v1599 = vrot.slane %v1598, 2
        %v1600 = vadd.f32 %v1598, %v1599
        %v1601 = vrot.slane %v1600, 1
        %v1602 = vadd.f32 %v1600, %v1601
        %v1603 = vadd.f32 %v1035, %v1067
        %v1604 = vadd.f32 %v1603, %v1099
        %v1605 = vadd.f32 %v1604, %v1131
        %v1606 = vadd.f32 %v1605, %v1163
        %v1607 = vadd.f32 %v1606, %v1195
        %v1608 = vadd.f32 %v1607, %v1227
        %v1609 = vadd.f32 %v1608, %v1259
        %v1610 = vrot.slane %v1609, 4
        %v1611 = vadd.f32 %v1609, %v1610
        %v1612 = vrot.slane %v1611, 2
        %v1613 = vadd.f32 %v1611, %v1612
        %v1614 = vrot.slane %v1613, 1
        %v1615 = vadd.f32 %v1613, %v1614
        %v1616 = vadd.f32 %v1036, %v1068
        %v1617 = vadd.f32 %v1616, %v1100
        %v1618 = vadd.f32 %v1617, %v1132
        %v1619 = vadd.f32 %v1618, %v1164
        %v1620 = vadd.f32 %v1619, %v1196
        %v1621 = vadd.f32 %v1620, %v1228
        %v1622 = vadd.f32 %v1621, %v1260
        %v1623 = vrot.slane %v1622, 4
        %v1624 = vadd.f32 %v1622, %v1623
        %v1625 = vrot.slane %v1624, 2
        %v1626 = vadd.f32 %v1624, %v1625
        %v1627 = vrot.slane %v1626, 1
        %v1628 = vadd.f32 %v1626, %v1627
        %v1629 = vadd.f32 %v1037, %v1069
        %v1630 = vadd.f32 %v1629, %v1101
        %v1631 = vadd.f32 %v1630, %v1133
        %v1632 = vadd.f32 %v1631, %v1165
        %v1633 = vadd.f32 %v1632, %v1197
        %v1634 = vadd.f32 %v1633, %v1229
        %v1635 = vadd.f32 %v1634, %v1261
        %v1636 = vrot.slane %v1635, 4
        %v1637 = vadd.f32 %v1635, %v1636
        %v1638 = vrot.slane %v1637, 2
        %v1639 = vadd.f32 %v1637, %v1638
        %v1640 = vrot.slane %v1639, 1
        %v1641 = vadd.f32 %v1639, %v1640
        %v1642 = vadd.f32 %v1038, %v1070
        %v1643 = vadd.f32 %v1642, %v1102
        %v1644 = vadd.f32 %v1643, %v1134
        %v1645 = vadd.f32 %v1644, %v1166
        %v1646 = vadd.f32 %v1645, %v1198
        %v1647 = vadd.f32 %v1646, %v1230
        %v1648 = vadd.f32 %v1647, %v1262
        %v1649 = vrot.slane %v1648, 4
        %v1650 = vadd.f32 %v1648, %v1649
        %v1651 = vrot.slane %v1650, 2
        %v1652 = vadd.f32 %v1650, %v1651
        %v1653 = vrot.slane %v1652, 1
        %v1654 = vadd.f32 %v1652, %v1653
        %v1655 = vadd.f32 %v1039, %v1071
        %v1656 = vadd.f32 %v1655, %v1103
        %v1657 = vadd.f32 %v1656, %v1135
        %v1658 = vadd.f32 %v1657, %v1167
        %v1659 = vadd.f32 %v1658, %v1199
        %v1660 = vadd.f32 %v1659, %v1231
        %v1661 = vadd.f32 %v1660, %v1263
        %v1662 = vrot.slane %v1661, 4
        %v1663 = vadd.f32 %v1661, %v1662
        %v1664 = vrot.slane %v1663, 2
        %v1665 = vadd.f32 %v1663, %v1664
        %v1666 = vrot.slane %v1665, 1
        %v1667 = vadd.f32 %v1665, %v1666
        %v1668 = vadd.f32 %v1040, %v1072
        %v1669 = vadd.f32 %v1668, %v1104
        %v1670 = vadd.f32 %v1669, %v1136
        %v1671 = vadd.f32 %v1670, %v1168
        %v1672 = vadd.f32 %v1671, %v1200
        %v1673 = vadd.f32 %v1672, %v1232
        %v1674 = vadd.f32 %v1673, %v1264
        %v1675 = vrot.slane %v1674, 4
        %v1676 = vadd.f32 %v1674, %v1675
        %v1677 = vrot.slane %v1676, 2
        %v1678 = vadd.f32 %v1676, %v1677
        %v1679 = vrot.slane %v1678, 1
        %v1680 = vadd.f32 %v1678, %v1679
        %1682 = vset.pattern.permute.xlu0 1
        %1683 = vperm.xlu0 %1682, %v968
        %v1684 = vpop.permute.xlu0 %1683
        %v1686 = vadd.f32 %v1277, %v1684
        %v1687 = vadd.f32 %v1290, %v1684
        %v1688 = vadd.f32 %v1303, %v1684
        %v1689 = vadd.f32 %v1316, %v1684
        %v1690 = vadd.f32 %v1329, %v1684
        %v1691 = vadd.f32 %v1342, %v1684
        %v1692 = vadd.f32 %v1355, %v1684
        %v1693 = vadd.f32 %v1368, %v1684
        %v1694 = vadd.f32 %v1381, %v1684
        %v1695 = vadd.f32 %v1394, %v1684
        %v1696 = vadd.f32 %v1407, %v1684
        %v1697 = vadd.f32 %v1420, %v1684
        %v1698 = vadd.f32 %v1433, %v1684
        %v1699 = vadd.f32 %v1446, %v1684
        %v1700 = vadd.f32 %v1459, %v1684
        %v1701 = vadd.f32 %v1472, %v1684
        %v1702 = vadd.f32 %v1485, %v1684
        %v1703 = vadd.f32 %v1498, %v1684
        %v1704 = vadd.f32 %v1511, %v1684
        %v1705 = vadd.f32 %v1524, %v1684
        %v1706 = vadd.f32 %v1537, %v1684
        %v1707 = vadd.f32 %v1550, %v1684
        %v1708 = vadd.f32 %v1563, %v1684
        %v1709 = vadd.f32 %v1576, %v1684
        %v1710 = vadd.f32 %v1589, %v1684
        %v1711 = vadd.f32 %v1602, %v1684
        %v1712 = vadd.f32 %v1615, %v1684
        %v1713 = vadd.f32 %v1628, %v1684
        %v1714 = vadd.f32 %v1641, %v1684
        %v1715 = vadd.f32 %v1654, %v1684
        %v1716 = vadd.f32 %v1667, %v1684
        %v1717 = vadd.f32 %v1680, %v1684
        %v1718 = vxor.u32 %v1686, 2147483648
        %v1719 = vxor.u32 %v1687, 2147483648
        %v1720 = vxor.u32 %v1688, 2147483648
        %v1721 = vxor.u32 %v1689, 2147483648
        %v1722 = vxor.u32 %v1690, 2147483648
        %v1723 = vxor.u32 %v1691, 2147483648
        %v1724 = vxor.u32 %v1692, 2147483648
        %v1725 = vxor.u32 %v1693, 2147483648
        %v1726 = vxor.u32 %v1694, 2147483648
        %v1727 = vxor.u32 %v1695, 2147483648
        %v1728 = vxor.u32 %v1696, 2147483648
        %v1729 = vxor.u32 %v1697, 2147483648
        %v1730 = vxor.u32 %v1698, 2147483648
        %v1731 = vxor.u32 %v1699, 2147483648
        %v1732 = vxor.u32 %v1700, 2147483648
        %v1733 = vxor.u32 %v1701, 2147483648
        %v1734 = vxor.u32 %v1702, 2147483648
        %v1735 = vxor.u32 %v1703, 2147483648
        %v1736 = vxor.u32 %v1704, 2147483648
        %v1737 = vxor.u32 %v1705, 2147483648
        %v1738 = vxor.u32 %v1706, 2147483648
        %v1739 = vxor.u32 %v1707, 2147483648
        %v1740 = vxor.u32 %v1708, 2147483648
        %v1741 = vxor.u32 %v1709, 2147483648
        %v1742 = vxor.u32 %v1710, 2147483648
        %v1743 = vxor.u32 %v1711, 2147483648
        %v1744 = vxor.u32 %v1712, 2147483648
        %v1745 = vxor.u32 %v1713, 2147483648
        %v1746 = vxor.u32 %v1714, 2147483648
        %v1747 = vxor.u32 %v1715, 2147483648
        %v1748 = vxor.u32 %v1716, 2147483648
        %v1749 = vxor.u32 %v1717, 2147483648
        %v1750 = vmul.f32 %v1718, 1.442695
        %v1751 = vpow.pop %v1750
        %v1752 = vmul.f32 %v1719, 1.442695
        %v1753 = vpow.pop %v1752
        %v1754 = vmul.f32 %v1720, 1.442695
        %v1755 = vpow.pop %v1754
        %v1756 = vmul.f32 %v1721, 1.442695
        %v1757 = vpow.pop %v1756
        %v1758 = vmul.f32 %v1722, 1.442695
        %v1759 = vpow.pop %v1758
        %v1760 = vmul.f32 %v1723, 1.442695
        %v1761 = vpow.pop %v1760
        %v1762 = vmul.f32 %v1724, 1.442695
        %v1763 = vpow.pop %v1762
        %v1764 = vmul.f32 %v1725, 1.442695
        %v1765 = vpow.pop %v1764
        %v1766 = vmul.f32 %v1726, 1.442695
        %v1767 = vpow.pop %v1766
        %v1768 = vmul.f32 %v1727, 1.442695
        %v1769 = vpow.pop %v1768
        %v1770 = vmul.f32 %v1728, 1.442695
        %v1771 = vpow.pop %v1770
        %v1772 = vmul.f32 %v1729, 1.442695
        %v1773 = vpow.pop %v1772
        %v1774 = vmul.f32 %v1730, 1.442695
        %v1775 = vpow.pop %v1774
        %v1776 = vmul.f32 %v1731, 1.442695
        %v1777 = vpow.pop %v1776
        %v1778 = vmul.f32 %v1732, 1.442695
        %v1779 = vpow.pop %v1778
        %v1780 = vmul.f32 %v1733, 1.442695
        %v1781 = vpow.pop %v1780
        %v1782 = vmul.f32 %v1734, 1.442695
        %v1783 = vpow.pop %v1782
        %v1784 = vmul.f32 %v1735, 1.442695
        %v1785 = vpow.pop %v1784
        %v1786 = vmul.f32 %v1736, 1.442695
        %v1787 = vpow.pop %v1786
        %v1788 = vmul.f32 %v1737, 1.442695
        %v1789 = vpow.pop %v1788
        %v1790 = vmul.f32 %v1738, 1.442695
        %v1791 = vpow.pop %v1790
        %v1792 = vmul.f32 %v1739, 1.442695
        %v1793 = vpow.pop %v1792
        %v1794 = vmul.f32 %v1740, 1.442695
        %v1795 = vpow.pop %v1794
        %v1796 = vmul.f32 %v1741, 1.442695
        %v1797 = vpow.pop %v1796
        %v1798 = vmul.f32 %v1742, 1.442695
        %v1799 = vpow.pop %v1798
        %v1800 = vmul.f32 %v1743, 1.442695
        %v1801 = vpow.pop %v1800
        %v1802 = vmul.f32 %v1744, 1.442695
        %v1803 = vpow.pop %v1802
        %v1804 = vmul.f32 %v1745, 1.442695
        %v1805 = vpow.pop %v1804
        %v1806 = vmul.f32 %v1746, 1.442695
        %v1807 = vpow.pop %v1806
        %v1808 = vmul.f32 %v1747, 1.442695
        %v1809 = vpow.pop %v1808
        %v1810 = vmul.f32 %v1748, 1.442695
        %v1811 = vpow.pop %v1810
        %v1812 = vmul.f32 %v1749, 1.442695
        %v1813 = vpow.pop %v1812
        %v1814 = vadd.f32 %v1751, 1.0
        %v1815 = vadd.f32 %v1753, 1.0
        %v1816 = vadd.f32 %v1755, 1.0
        %v1817 = vadd.f32 %v1757, 1.0
        %v1818 = vadd.f32 %v1759, 1.0
        %v1819 = vadd.f32 %v1761, 1.0
        %v1820 = vadd.f32 %v1763, 1.0
        %v1821 = vadd.f32 %v1765, 1.0
        %v1822 = vadd.f32 %v1767, 1.0
        %v1823 = vadd.f32 %v1769, 1.0
        %v1824 = vadd.f32 %v1771, 1.0
        %v1825 = vadd.f32 %v1773, 1.0
        %v1826 = vadd.f32 %v1775, 1.0
        %v1827 = vadd.f32 %v1777, 1.0
        %v1828 = vadd.f32 %v1779, 1.0
        %v1829 = vadd.f32 %v1781, 1.0
        %v1830 = vadd.f32 %v1783, 1.0
        %v1831 = vadd.f32 %v1785, 1.0
        %v1832 = vadd.f32 %v1787, 1.0
        %v1833 = vadd.f32 %v1789, 1.0
        %v1834 = vadd.f32 %v1791, 1.0
        %v1835 = vadd.f32 %v1793, 1.0
        %v1836 = vadd.f32 %v1795, 1.0
        %v1837 = vadd.f32 %v1797, 1.0
        %v1838 = vadd.f32 %v1799, 1.0
        %v1839 = vadd.f32 %v1801, 1.0
        %v1840 = vadd.f32 %v1803, 1.0
        %v1841 = vadd.f32 %v1805, 1.0
        %v1842 = vadd.f32 %v1807, 1.0
        %v1843 = vadd.f32 %v1809, 1.0
        %v1844 = vadd.f32 %v1811, 1.0
        %v1845 = vadd.f32 %v1813, 1.0
        %v1846 = vrcp.pop %v1814
        %v1847 = vmul.f32 1.0, %v1846
        %v1848 = vrcp.pop %v1815
        %v1849 = vmul.f32 1.0, %v1848
        %v1850 = vrcp.pop %v1816
        %v1851 = vmul.f32 1.0, %v1850
        %v1852 = vrcp.pop %v1817
        %v1853 = vmul.f32 1.0, %v1852
        %v1854 = vrcp.pop %v1818
        %v1855 = vmul.f32 1.0, %v1854
        %v1856 = vrcp.pop %v1819
        %v1857 = vmul.f32 1.0, %v1856
        %v1858 = vrcp.pop %v1820
        %v1859 = vmul.f32 1.0, %v1858
        %v1860 = vrcp.pop %v1821
        %v1861 = vmul.f32 1.0, %v1860
        %v1862 = vrcp.pop %v1822
        %v1863 = vmul.f32 1.0, %v1862
        %v1864 = vrcp.pop %v1823
        %v1865 = vmul.f32 1.0, %v1864
        %v1866 = vrcp.pop %v1824
        %v1867 = vmul.f32 1.0, %v1866
        %v1868 = vrcp.pop %v1825
        %v1869 = vmul.f32 1.0, %v1868
        %v1870 = vrcp.pop %v1826
        %v1871 = vmul.f32 1.0, %v1870
        %v1872 = vrcp.pop %v1827
        %v1873 = vmul.f32 1.0, %v1872
        %v1874 = vrcp.pop %v1828
        %v1875 = vmul.f32 1.0, %v1874
        %v1876 = vrcp.pop %v1829
        %v1877 = vmul.f32 1.0, %v1876
        %v1878 = vrcp.pop %v1830
        %v1879 = vmul.f32 1.0, %v1878
        %v1880 = vrcp.pop %v1831
        %v1881 = vmul.f32 1.0, %v1880
        %v1882 = vrcp.pop %v1832
        %v1883 = vmul.f32 1.0, %v1882
        %v1884 = vrcp.pop %v1833
        %v1885 = vmul.f32 1.0, %v1884
        %v1886 = vrcp.pop %v1834
        %v1887 = vmul.f32 1.0, %v1886
        %v1888 = vrcp.pop %v1835
        %v1889 = vmul.f32 1.0, %v1888
        %v1890 = vrcp.pop %v1836
        %v1891 = vmul.f32 1.0, %v1890
        %v1892 = vrcp.pop %v1837
        %v1893 = vmul.f32 1.0, %v1892
        %v1894 = vrcp.pop %v1838
        %v1895 = vmul.f32 1.0, %v1894
        %v1896 = vrcp.pop %v1839
        %v1897 = vmul.f32 1.0, %v1896
        %v1898 = vrcp.pop %v1840
        %v1899 = vmul.f32 1.0, %v1898
        %v1900 = vrcp.pop %v1841
        %v1901 = vmul.f32 1.0, %v1900
        %v1902 = vrcp.pop %v1842
        %v1903 = vmul.f32 1.0, %v1902
        %v1904 = vrcp.pop %v1843
        %v1905 = vmul.f32 1.0, %v1904
        %v1906 = vrcp.pop %v1844
        %v1907 = vmul.f32 1.0, %v1906
        %v1908 = vrcp.pop %v1845
        %v1909 = vmul.f32 1.0, %v1908
        %1911 = vset.pattern.permute.xlu0 0
        %1912 = vperm.xlu0 %1911, %v945
        %v1913 = vpop.permute.xlu0 %1912
        %1916 = vset.pattern.permute.xlu0 0
        %1917 = vperm.xlu0 %1916, %v947
        %v1918 = vpop.permute.xlu0 %1917
        %1921 = vset.pattern.permute.xlu0 0
        %1922 = vperm.xlu0 %1921, %v949
        %v1923 = vpop.permute.xlu0 %1922
        %1926 = vset.pattern.permute.xlu0 0
        %1927 = vperm.xlu0 %1926, %v951
        %v1928 = vpop.permute.xlu0 %1927
        %1931 = vset.pattern.permute.xlu0 0
        %1932 = vperm.xlu0 %1931, %v953
        %v1933 = vpop.permute.xlu0 %1932
        %1936 = vset.pattern.permute.xlu0 0
        %1937 = vperm.xlu0 %1936, %v955
        %v1938 = vpop.permute.xlu0 %1937
        %1941 = vset.pattern.permute.xlu0 0
        %1942 = vperm.xlu0 %1941, %v957
        %v1943 = vpop.permute.xlu0 %1942
        %1946 = vset.pattern.permute.xlu0 0
        %1947 = vperm.xlu0 %1946, %v959
        %v1948 = vpop.permute.xlu0 %1947
        %v1950 = vlaneseq
        %v1951 = vshrl.u32 %v1950, 7
        %v1952 = vsub.s32 0, %v1951
        %v1953 = vrot.slane %v1847, %v1952
        %v1954 = vlaneseq
        %v1955 = vshrl.u32 %v1954, 7
        %v1956 = vsub.s32 0, %v1955
        %v1957 = vrot.slane %v1849, %v1956
        %v1958 = vlaneseq
        %v1959 = vshrl.u32 %v1958, 7
        %v1960 = vsub.s32 0, %v1959
        %v1961 = vrot.slane %v1851, %v1960
        %v1962 = vlaneseq
        %v1963 = vshrl.u32 %v1962, 7
        %v1964 = vsub.s32 0, %v1963
        %v1965 = vrot.slane %v1853, %v1964
        %v1966 = vlaneseq
        %v1967 = vshrl.u32 %v1966, 7
        %v1968 = vsub.s32 0, %v1967
        %v1969 = vrot.slane %v1855, %v1968
        %v1970 = vlaneseq
        %v1971 = vshrl.u32 %v1970, 7
        %v1972 = vsub.s32 0, %v1971
        %v1973 = vrot.slane %v1857, %v1972
        %v1974 = vlaneseq
        %v1975 = vshrl.u32 %v1974, 7
        %v1976 = vsub.s32 0, %v1975
        %v1977 = vrot.slane %v1859, %v1976
        %v1978 = vlaneseq
        %v1979 = vshrl.u32 %v1978, 7
        %v1980 = vsub.s32 0, %v1979
        %v1981 = vrot.slane %v1861, %v1980
        %v1982 = vlaneseq
        %v1983 = vshrl.u32 %v1982, 7
        %v1984 = vsub.s32 0, %v1983
        %v1985 = vrot.slane %v1863, %v1984
        %v1986 = vlaneseq
        %v1987 = vshrl.u32 %v1986, 7
        %v1988 = vsub.s32 0, %v1987
        %v1989 = vrot.slane %v1865, %v1988
        %v1990 = vlaneseq
        %v1991 = vshrl.u32 %v1990, 7
        %v1992 = vsub.s32 0, %v1991
        %v1993 = vrot.slane %v1867, %v1992
        %v1994 = vlaneseq
        %v1995 = vshrl.u32 %v1994, 7
        %v1996 = vsub.s32 0, %v1995
        %v1997 = vrot.slane %v1869, %v1996
        %v1998 = vlaneseq
        %v1999 = vshrl.u32 %v1998, 7
        %v2000 = vsub.s32 0, %v1999
        %v2001 = vrot.slane %v1871, %v2000
        %v2002 = vlaneseq
        %v2003 = vshrl.u32 %v2002, 7
        %v2004 = vsub.s32 0, %v2003
        %v2005 = vrot.slane %v1873, %v2004
        %v2006 = vlaneseq
        %v2007 = vshrl.u32 %v2006, 7
        %v2008 = vsub.s32 0, %v2007
        %v2009 = vrot.slane %v1875, %v2008
        %v2010 = vlaneseq
        %v2011 = vshrl.u32 %v2010, 7
        %v2012 = vsub.s32 0, %v2011
        %v2013 = vrot.slane %v1877, %v2012
        %v2014 = vlaneseq
        %v2015 = vshrl.u32 %v2014, 7
        %v2016 = vsub.s32 0, %v2015
        %v2017 = vrot.slane %v1879, %v2016
        %v2018 = vlaneseq
        %v2019 = vshrl.u32 %v2018, 7
        %v2020 = vsub.s32 0, %v2019
        %v2021 = vrot.slane %v1881, %v2020
        %v2022 = vlaneseq
        %v2023 = vshrl.u32 %v2022, 7
        %v2024 = vsub.s32 0, %v2023
        %v2025 = vrot.slane %v1883, %v2024
        %v2026 = vlaneseq
        %v2027 = vshrl.u32 %v2026, 7
        %v2028 = vsub.s32 0, %v2027
        %v2029 = vrot.slane %v1885, %v2028
        %v2030 = vlaneseq
        %v2031 = vshrl.u32 %v2030, 7
        %v2032 = vsub.s32 0, %v2031
        %v2033 = vrot.slane %v1887, %v2032
        %v2034 = vlaneseq
        %v2035 = vshrl.u32 %v2034, 7
        %v2036 = vsub.s32 0, %v2035
        %v2037 = vrot.slane %v1889, %v2036
        %v2038 = vlaneseq
        %v2039 = vshrl.u32 %v2038, 7
        %v2040 = vsub.s32 0, %v2039
        %v2041 = vrot.slane %v1891, %v2040
        %v2042 = vlaneseq
        %v2043 = vshrl.u32 %v2042, 7
        %v2044 = vsub.s32 0, %v2043
        %v2045 = vrot.slane %v1893, %v2044
        %v2046 = vlaneseq
        %v2047 = vshrl.u32 %v2046, 7
        %v2048 = vsub.s32 0, %v2047
        %v2049 = vrot.slane %v1895, %v2048
        %v2050 = vlaneseq
        %v2051 = vshrl.u32 %v2050, 7
        %v2052 = vsub.s32 0, %v2051
        %v2053 = vrot.slane %v1897, %v2052
        %v2054 = vlaneseq
        %v2055 = vshrl.u32 %v2054, 7
        %v2056 = vsub.s32 0, %v2055
        %v2057 = vrot.slane %v1899, %v2056
        %v2058 = vlaneseq
        %v2059 = vshrl.u32 %v2058, 7
        %v2060 = vsub.s32 0, %v2059
        %v2061 = vrot.slane %v1901, %v2060
        %v2062 = vlaneseq
        %v2063 = vshrl.u32 %v2062, 7
        %v2064 = vsub.s32 0, %v2063
        %v2065 = vrot.slane %v1903, %v2064
        %v2066 = vlaneseq
        %v2067 = vshrl.u32 %v2066, 7
        %v2068 = vsub.s32 0, %v2067
        %v2069 = vrot.slane %v1905, %v2068
        %v2070 = vlaneseq
        %v2071 = vshrl.u32 %v2070, 7
        %v2072 = vsub.s32 0, %v2071
        %v2073 = vrot.slane %v1907, %v2072
        %v2074 = vlaneseq
        %v2075 = vshrl.u32 %v2074, 7
        %v2076 = vsub.s32 0, %v2075
        %v2077 = vrot.slane %v1909, %v2076
        %v2078 = vadd.f32 %v1913, %v1953
        %v2079 = vadd.f32 %v1913, %v1957
        %v2080 = vadd.f32 %v1913, %v1961
        %v2081 = vadd.f32 %v1913, %v1965
        %v2082 = vadd.f32 %v1913, %v1969
        %v2083 = vadd.f32 %v1913, %v1973
        %v2084 = vadd.f32 %v1913, %v1977
        %v2085 = vadd.f32 %v1913, %v1981
        %v2086 = vadd.f32 %v1913, %v1985
        %v2087 = vadd.f32 %v1913, %v1989
        %v2088 = vadd.f32 %v1913, %v1993
        %v2089 = vadd.f32 %v1913, %v1997
        %v2090 = vadd.f32 %v1913, %v2001
        %v2091 = vadd.f32 %v1913, %v2005
        %v2092 = vadd.f32 %v1913, %v2009
        %v2093 = vadd.f32 %v1913, %v2013
        %v2094 = vadd.f32 %v1913, %v2017
        %v2095 = vadd.f32 %v1913, %v2021
        %v2096 = vadd.f32 %v1913, %v2025
        %v2097 = vadd.f32 %v1913, %v2029
        %v2098 = vadd.f32 %v1913, %v2033
        %v2099 = vadd.f32 %v1913, %v2037
        %v2100 = vadd.f32 %v1913, %v2041
        %v2101 = vadd.f32 %v1913, %v2045
        %v2102 = vadd.f32 %v1913, %v2049
        %v2103 = vadd.f32 %v1913, %v2053
        %v2104 = vadd.f32 %v1913, %v2057
        %v2105 = vadd.f32 %v1913, %v2061
        %v2106 = vadd.f32 %v1913, %v2065
        %v2107 = vadd.f32 %v1913, %v2069
        %v2108 = vadd.f32 %v1913, %v2073
        %v2109 = vadd.f32 %v1913, %v2077
        %v2110 = vadd.f32 %v1918, %v1953
        %v2111 = vadd.f32 %v1918, %v1957
        %v2112 = vadd.f32 %v1918, %v1961
        %v2113 = vadd.f32 %v1918, %v1965
        %v2114 = vadd.f32 %v1918, %v1969
        %v2115 = vadd.f32 %v1918, %v1973
        %v2116 = vadd.f32 %v1918, %v1977
        %v2117 = vadd.f32 %v1918, %v1981
        %v2118 = vadd.f32 %v1918, %v1985
        %v2119 = vadd.f32 %v1918, %v1989
        %v2120 = vadd.f32 %v1918, %v1993
        %v2121 = vadd.f32 %v1918, %v1997
        %v2122 = vadd.f32 %v1918, %v2001
        %v2123 = vadd.f32 %v1918, %v2005
        %v2124 = vadd.f32 %v1918, %v2009
        %v2125 = vadd.f32 %v1918, %v2013
        %v2126 = vadd.f32 %v1918, %v2017
        %v2127 = vadd.f32 %v1918, %v2021
        %v2128 = vadd.f32 %v1918, %v2025
        %v2129 = vadd.f32 %v1918, %v2029
        %v2130 = vadd.f32 %v1918, %v2033
        %v2131 = vadd.f32 %v1918, %v2037
        %v2132 = vadd.f32 %v1918, %v2041
        %v2133 = vadd.f32 %v1918, %v2045
        %v2134 = vadd.f32 %v1918, %v2049
        %v2135 = vadd.f32 %v1918, %v2053
        %v2136 = vadd.f32 %v1918, %v2057
        %v2137 = vadd.f32 %v1918, %v2061
        %v2138 = vadd.f32 %v1918, %v2065
        %v2139 = vadd.f32 %v1918, %v2069
        %v2140 = vadd.f32 %v1918, %v2073
        %v2141 = vadd.f32 %v1918, %v2077
        %v2142 = vadd.f32 %v1923, %v1953
        %v2143 = vadd.f32 %v1923, %v1957
        %v2144 = vadd.f32 %v1923, %v1961
        %v2145 = vadd.f32 %v1923, %v1965
        %v2146 = vadd.f32 %v1923, %v1969
        %v2147 = vadd.f32 %v1923, %v1973
        %v2148 = vadd.f32 %v1923, %v1977
        %v2149 = vadd.f32 %v1923, %v1981
        %v2150 = vadd.f32 %v1923, %v1985
        %v2151 = vadd.f32 %v1923, %v1989
        %v2152 = vadd.f32 %v1923, %v1993
        %v2153 = vadd.f32 %v1923, %v1997
        %v2154 = vadd.f32 %v1923, %v2001
        %v2155 = vadd.f32 %v1923, %v2005
        %v2156 = vadd.f32 %v1923, %v2009
        %v2157 = vadd.f32 %v1923, %v2013
        %v2158 = vadd.f32 %v1923, %v2017
        %v2159 = vadd.f32 %v1923, %v2021
        %v2160 = vadd.f32 %v1923, %v2025
        %v2161 = vadd.f32 %v1923, %v2029
        %v2162 = vadd.f32 %v1923, %v2033
        %v2163 = vadd.f32 %v1923, %v2037
        %v2164 = vadd.f32 %v1923, %v2041
        %v2165 = vadd.f32 %v1923, %v2045
        %v2166 = vadd.f32 %v1923, %v2049
        %v2167 = vadd.f32 %v1923, %v2053
        %v2168 = vadd.f32 %v1923, %v2057
        %v2169 = vadd.f32 %v1923, %v2061
        %v2170 = vadd.f32 %v1923, %v2065
        %v2171 = vadd.f32 %v1923, %v2069
        %v2172 = vadd.f32 %v1923, %v2073
        %v2173 = vadd.f32 %v1923, %v2077
        %v2174 = vadd.f32 %v1928, %v1953
        %v2175 = vadd.f32 %v1928, %v1957
        %v2176 = vadd.f32 %v1928, %v1961
        %v2177 = vadd.f32 %v1928, %v1965
        %v2178 = vadd.f32 %v1928, %v1969
        %v2179 = vadd.f32 %v1928, %v1973
        %v2180 = vadd.f32 %v1928, %v1977
        %v2181 = vadd.f32 %v1928, %v1981
        %v2182 = vadd.f32 %v1928, %v1985
        %v2183 = vadd.f32 %v1928, %v1989
        %v2184 = vadd.f32 %v1928, %v1993
        %v2185 = vadd.f32 %v1928, %v1997
        %v2186 = vadd.f32 %v1928, %v2001
        %v2187 = vadd.f32 %v1928, %v2005
        %v2188 = vadd.f32 %v1928, %v2009
        %v2189 = vadd.f32 %v1928, %v2013
        %v2190 = vadd.f32 %v1928, %v2017
        %v2191 = vadd.f32 %v1928, %v2021
        %v2192 = vadd.f32 %v1928, %v2025
        %v2193 = vadd.f32 %v1928, %v2029
        %v2194 = vadd.f32 %v1928, %v2033
        %v2195 = vadd.f32 %v1928, %v2037
        %v2196 = vadd.f32 %v1928, %v2041
        %v2197 = vadd.f32 %v1928, %v2045
        %v2198 = vadd.f32 %v1928, %v2049
        %v2199 = vadd.f32 %v1928, %v2053
        %v2200 = vadd.f32 %v1928, %v2057
        %v2201 = vadd.f32 %v1928, %v2061
        %v2202 = vadd.f32 %v1928, %v2065
        %v2203 = vadd.f32 %v1928, %v2069
        %v2204 = vadd.f32 %v1928, %v2073
        %v2205 = vadd.f32 %v1928, %v2077
        %v2206 = vadd.f32 %v1933, %v1953
        %v2207 = vadd.f32 %v1933, %v1957
        %v2208 = vadd.f32 %v1933, %v1961
        %v2209 = vadd.f32 %v1933, %v1965
        %v2210 = vadd.f32 %v1933, %v1969
        %v2211 = vadd.f32 %v1933, %v1973
        %v2212 = vadd.f32 %v1933, %v1977
        %v2213 = vadd.f32 %v1933, %v1981
        %v2214 = vadd.f32 %v1933, %v1985
        %v2215 = vadd.f32 %v1933, %v1989
        %v2216 = vadd.f32 %v1933, %v1993
        %v2217 = vadd.f32 %v1933, %v1997
        %v2218 = vadd.f32 %v1933, %v2001
        %v2219 = vadd.f32 %v1933, %v2005
        %v2220 = vadd.f32 %v1933, %v2009
        %v2221 = vadd.f32 %v1933, %v2013
        %v2222 = vadd.f32 %v1933, %v2017
        %v2223 = vadd.f32 %v1933, %v2021
        %v2224 = vadd.f32 %v1933, %v2025
        %v2225 = vadd.f32 %v1933, %v2029
        %v2226 = vadd.f32 %v1933, %v2033
        %v2227 = vadd.f32 %v1933, %v2037
        %v2228 = vadd.f32 %v1933, %v2041
        %v2229 = vadd.f32 %v1933, %v2045
        %v2230 = vadd.f32 %v1933, %v2049
        %v2231 = vadd.f32 %v1933, %v2053
        %v2232 = vadd.f32 %v1933, %v2057
        %v2233 = vadd.f32 %v1933, %v2061
        %v2234 = vadd.f32 %v1933, %v2065
        %v2235 = vadd.f32 %v1933, %v2069
        %v2236 = vadd.f32 %v1933, %v2073
        %v2237 = vadd.f32 %v1933, %v2077
        %v2238 = vadd.f32 %v1938, %v1953
        %v2239 = vadd.f32 %v1938, %v1957
        %v2240 = vadd.f32 %v1938, %v1961
        %v2241 = vadd.f32 %v1938, %v1965
        %v2242 = vadd.f32 %v1938, %v1969
        %v2243 = vadd.f32 %v1938, %v1973
        %v2244 = vadd.f32 %v1938, %v1977
        %v2245 = vadd.f32 %v1938, %v1981
        %v2246 = vadd.f32 %v1938, %v1985
        %v2247 = vadd.f32 %v1938, %v1989
        %v2248 = vadd.f32 %v1938, %v1993
        %v2249 = vadd.f32 %v1938, %v1997
        %v2250 = vadd.f32 %v1938, %v2001
        %v2251 = vadd.f32 %v1938, %v2005
        %v2252 = vadd.f32 %v1938, %v2009
        %v2253 = vadd.f32 %v1938, %v2013
        %v2254 = vadd.f32 %v1938, %v2017
        %v2255 = vadd.f32 %v1938, %v2021
        %v2256 = vadd.f32 %v1938, %v2025
        %v2257 = vadd.f32 %v1938, %v2029
        %v2258 = vadd.f32 %v1938, %v2033
        %v2259 = vadd.f32 %v1938, %v2037
        %v2260 = vadd.f32 %v1938, %v2041
        %v2261 = vadd.f32 %v1938, %v2045
        %v2262 = vadd.f32 %v1938, %v2049
        %v2263 = vadd.f32 %v1938, %v2053
        %v2264 = vadd.f32 %v1938, %v2057
        %v2265 = vadd.f32 %v1938, %v2061
        %v2266 = vadd.f32 %v1938, %v2065
        %v2267 = vadd.f32 %v1938, %v2069
        %v2268 = vadd.f32 %v1938, %v2073
        %v2269 = vadd.f32 %v1938, %v2077
        %v2270 = vadd.f32 %v1943, %v1953
        %v2271 = vadd.f32 %v1943, %v1957
        %v2272 = vadd.f32 %v1943, %v1961
        %v2273 = vadd.f32 %v1943, %v1965
        %v2274 = vadd.f32 %v1943, %v1969
        %v2275 = vadd.f32 %v1943, %v1973
        %v2276 = vadd.f32 %v1943, %v1977
        %v2277 = vadd.f32 %v1943, %v1981
        %v2278 = vadd.f32 %v1943, %v1985
        %v2279 = vadd.f32 %v1943, %v1989
        %v2280 = vadd.f32 %v1943, %v1993
        %v2281 = vadd.f32 %v1943, %v1997
        %v2282 = vadd.f32 %v1943, %v2001
        %v2283 = vadd.f32 %v1943, %v2005
        %v2284 = vadd.f32 %v1943, %v2009
        %v2285 = vadd.f32 %v1943, %v2013
        %v2286 = vadd.f32 %v1943, %v2017
        %v2287 = vadd.f32 %v1943, %v2021
        %v2288 = vadd.f32 %v1943, %v2025
        %v2289 = vadd.f32 %v1943, %v2029
        %v2290 = vadd.f32 %v1943, %v2033
        %v2291 = vadd.f32 %v1943, %v2037
        %v2292 = vadd.f32 %v1943, %v2041
        %v2293 = vadd.f32 %v1943, %v2045
        %v2294 = vadd.f32 %v1943, %v2049
        %v2295 = vadd.f32 %v1943, %v2053
        %v2296 = vadd.f32 %v1943, %v2057
        %v2297 = vadd.f32 %v1943, %v2061
        %v2298 = vadd.f32 %v1943, %v2065
        %v2299 = vadd.f32 %v1943, %v2069
        %v2300 = vadd.f32 %v1943, %v2073
        %v2301 = vadd.f32 %v1943, %v2077
        %v2302 = vadd.f32 %v1948, %v1953
        %v2303 = vadd.f32 %v1948, %v1957
        %v2304 = vadd.f32 %v1948, %v1961
        %v2305 = vadd.f32 %v1948, %v1965
        %v2306 = vadd.f32 %v1948, %v1969
        %v2307 = vadd.f32 %v1948, %v1973
        %v2308 = vadd.f32 %v1948, %v1977
        %v2309 = vadd.f32 %v1948, %v1981
        %v2310 = vadd.f32 %v1948, %v1985
        %v2311 = vadd.f32 %v1948, %v1989
        %v2312 = vadd.f32 %v1948, %v1993
        %v2313 = vadd.f32 %v1948, %v1997
        %v2314 = vadd.f32 %v1948, %v2001
        %v2315 = vadd.f32 %v1948, %v2005
        %v2316 = vadd.f32 %v1948, %v2009
        %v2317 = vadd.f32 %v1948, %v2013
        %v2318 = vadd.f32 %v1948, %v2017
        %v2319 = vadd.f32 %v1948, %v2021
        %v2320 = vadd.f32 %v1948, %v2025
        %v2321 = vadd.f32 %v1948, %v2029
        %v2322 = vadd.f32 %v1948, %v2033
        %v2323 = vadd.f32 %v1948, %v2037
        %v2324 = vadd.f32 %v1948, %v2041
        %v2325 = vadd.f32 %v1948, %v2045
        %v2326 = vadd.f32 %v1948, %v2049
        %v2327 = vadd.f32 %v1948, %v2053
        %v2328 = vadd.f32 %v1948, %v2057
        %v2329 = vadd.f32 %v1948, %v2061
        %v2330 = vadd.f32 %v1948, %v2065
        %v2331 = vadd.f32 %v1948, %v2069
        %v2332 = vadd.f32 %v1948, %v2073
        %v2333 = vadd.f32 %v1948, %v2077
        %v2334 = vmul.f32 %v283, %v2078
        %v2335 = vmul.f32 %v284, %v2079
        %v2336 = vmul.f32 %v285, %v2080
        %v2337 = vmul.f32 %v286, %v2081
        %v2338 = vmul.f32 %v287, %v2082
        %v2339 = vmul.f32 %v288, %v2083
        %v2340 = vmul.f32 %v289, %v2084
        %v2341 = vmul.f32 %v290, %v2085
        %v2342 = vmul.f32 %v291, %v2086
        %v2343 = vmul.f32 %v292, %v2087
        %v2344 = vmul.f32 %v293, %v2088
        %v2345 = vmul.f32 %v294, %v2089
        %v2346 = vmul.f32 %v295, %v2090
        %v2347 = vmul.f32 %v296, %v2091
        %v2348 = vmul.f32 %v297, %v2092
        %v2349 = vmul.f32 %v298, %v2093
        %v2350 = vmul.f32 %v299, %v2094
        %v2351 = vmul.f32 %v300, %v2095
        %v2352 = vmul.f32 %v301, %v2096
        %v2353 = vmul.f32 %v302, %v2097
        %v2354 = vmul.f32 %v303, %v2098
        %v2355 = vmul.f32 %v304, %v2099
        %v2356 = vmul.f32 %v305, %v2100
        %v2357 = vmul.f32 %v306, %v2101
        %v2358 = vmul.f32 %v307, %v2102
        %v2359 = vmul.f32 %v308, %v2103
        %v2360 = vmul.f32 %v309, %v2104
        %v2361 = vmul.f32 %v310, %v2105
        %v2362 = vmul.f32 %v311, %v2106
        %v2363 = vmul.f32 %v312, %v2107
        %v2364 = vmul.f32 %v313, %v2108
        %v2365 = vmul.f32 %v314, %v2109
        %v2366 = vmul.f32 %v315, %v2110
        %v2367 = vmul.f32 %v316, %v2111
        %v2368 = vmul.f32 %v317, %v2112
        %v2369 = vmul.f32 %v318, %v2113
        %v2370 = vmul.f32 %v319, %v2114
        %v2371 = vmul.f32 %v320, %v2115
        %v2372 = vmul.f32 %v321, %v2116
        %v2373 = vmul.f32 %v322, %v2117
        %v2374 = vmul.f32 %v323, %v2118
        %v2375 = vmul.f32 %v324, %v2119
        %v2376 = vmul.f32 %v325, %v2120
        %v2377 = vmul.f32 %v326, %v2121
        %v2378 = vmul.f32 %v327, %v2122
        %v2379 = vmul.f32 %v328, %v2123
        %v2380 = vmul.f32 %v329, %v2124
        %v2381 = vmul.f32 %v330, %v2125
        %v2382 = vmul.f32 %v331, %v2126
        %v2383 = vmul.f32 %v332, %v2127
        %v2384 = vmul.f32 %v333, %v2128
        %v2385 = vmul.f32 %v334, %v2129
        %v2386 = vmul.f32 %v335, %v2130
        %v2387 = vmul.f32 %v336, %v2131
        %v2388 = vmul.f32 %v337, %v2132
        %v2389 = vmul.f32 %v338, %v2133
        %v2390 = vmul.f32 %v339, %v2134
        %v2391 = vmul.f32 %v340, %v2135
        %v2392 = vmul.f32 %v341, %v2136
        %v2393 = vmul.f32 %v342, %v2137
        %v2394 = vmul.f32 %v343, %v2138
        %v2395 = vmul.f32 %v344, %v2139
        %v2396 = vmul.f32 %v345, %v2140
        %v2397 = vmul.f32 %v346, %v2141
        %v2398 = vmul.f32 %v347, %v2142
        %v2399 = vmul.f32 %v348, %v2143
        %v2400 = vmul.f32 %v349, %v2144
        %v2401 = vmul.f32 %v350, %v2145
        %v2402 = vmul.f32 %v351, %v2146
        %v2403 = vmul.f32 %v352, %v2147
        %v2404 = vmul.f32 %v353, %v2148
        %v2405 = vmul.f32 %v354, %v2149
        %v2406 = vmul.f32 %v355, %v2150
        %v2407 = vmul.f32 %v356, %v2151
        %v2408 = vmul.f32 %v357, %v2152
        %v2409 = vmul.f32 %v358, %v2153
        %v2410 = vmul.f32 %v359, %v2154
        %v2411 = vmul.f32 %v360, %v2155
        %v2412 = vmul.f32 %v361, %v2156
        %v2413 = vmul.f32 %v362, %v2157
        %v2414 = vmul.f32 %v363, %v2158
        %v2415 = vmul.f32 %v364, %v2159
        %v2416 = vmul.f32 %v365, %v2160
        %v2417 = vmul.f32 %v366, %v2161
        %v2418 = vmul.f32 %v367, %v2162
        %v2419 = vmul.f32 %v368, %v2163
        %v2420 = vmul.f32 %v369, %v2164
        %v2421 = vmul.f32 %v370, %v2165
        %v2422 = vmul.f32 %v371, %v2166
        %v2423 = vmul.f32 %v372, %v2167
        %v2424 = vmul.f32 %v373, %v2168
        %v2425 = vmul.f32 %v374, %v2169
        %v2426 = vmul.f32 %v375, %v2170
        %v2427 = vmul.f32 %v376, %v2171
        %v2428 = vmul.f32 %v377, %v2172
        %v2429 = vmul.f32 %v378, %v2173
        %v2430 = vmul.f32 %v379, %v2174
        %v2431 = vmul.f32 %v380, %v2175
        %v2432 = vmul.f32 %v381, %v2176
        %v2433 = vmul.f32 %v382, %v2177
        %v2434 = vmul.f32 %v383, %v2178
        %v2435 = vmul.f32 %v384, %v2179
        %v2436 = vmul.f32 %v385, %v2180
        %v2437 = vmul.f32 %v386, %v2181
        %v2438 = vmul.f32 %v387, %v2182
        %v2439 = vmul.f32 %v388, %v2183
        %v2440 = vmul.f32 %v389, %v2184
        %v2441 = vmul.f32 %v390, %v2185
        %v2442 = vmul.f32 %v391, %v2186
        %v2443 = vmul.f32 %v392, %v2187
        %v2444 = vmul.f32 %v393, %v2188
        %v2445 = vmul.f32 %v394, %v2189
        %v2446 = vmul.f32 %v395, %v2190
        %v2447 = vmul.f32 %v396, %v2191
        %v2448 = vmul.f32 %v397, %v2192
        %v2449 = vmul.f32 %v398, %v2193
        %v2450 = vmul.f32 %v399, %v2194
        %v2451 = vmul.f32 %v400, %v2195
        %v2452 = vmul.f32 %v401, %v2196
        %v2453 = vmul.f32 %v402, %v2197
        %v2454 = vmul.f32 %v403, %v2198
        %v2455 = vmul.f32 %v404, %v2199
        %v2456 = vmul.f32 %v405, %v2200
        %v2457 = vmul.f32 %v406, %v2201
        %v2458 = vmul.f32 %v407, %v2202
        %v2459 = vmul.f32 %v408, %v2203
        %v2460 = vmul.f32 %v409, %v2204
        %v2461 = vmul.f32 %v410, %v2205
        %v2462 = vmul.f32 %v411, %v2206
        %v2463 = vmul.f32 %v412, %v2207
        %v2464 = vmul.f32 %v413, %v2208
        %v2465 = vmul.f32 %v414, %v2209
        %v2466 = vmul.f32 %v415, %v2210
        %v2467 = vmul.f32 %v416, %v2211
        %v2468 = vmul.f32 %v417, %v2212
        %v2469 = vmul.f32 %v418, %v2213
        %v2470 = vmul.f32 %v419, %v2214
        %v2471 = vmul.f32 %v420, %v2215
        %v2472 = vmul.f32 %v421, %v2216
        %v2473 = vmul.f32 %v422, %v2217
        %v2474 = vmul.f32 %v423, %v2218
        %v2475 = vmul.f32 %v424, %v2219
        %v2476 = vmul.f32 %v425, %v2220
        %v2477 = vmul.f32 %v426, %v2221
        %v2478 = vmul.f32 %v427, %v2222
        %v2479 = vmul.f32 %v428, %v2223
        %v2480 = vmul.f32 %v429, %v2224
        %v2481 = vmul.f32 %v430, %v2225
        %v2482 = vmul.f32 %v431, %v2226
        %v2483 = vmul.f32 %v432, %v2227
        %v2484 = vmul.f32 %v433, %v2228
        %v2485 = vmul.f32 %v434, %v2229
        %v2486 = vmul.f32 %v435, %v2230
        %v2487 = vmul.f32 %v436, %v2231
        %v2488 = vmul.f32 %v437, %v2232
        %v2489 = vmul.f32 %v438, %v2233
        %v2490 = vmul.f32 %v439, %v2234
        %v2491 = vmul.f32 %v440, %v2235
        %v2492 = vmul.f32 %v441, %v2236
        %v2493 = vmul.f32 %v442, %v2237
        %v2494 = vmul.f32 %v443, %v2238
        %v2495 = vmul.f32 %v444, %v2239
        %v2496 = vmul.f32 %v445, %v2240
        %v2497 = vmul.f32 %v446, %v2241
        %v2498 = vmul.f32 %v447, %v2242
        %v2499 = vmul.f32 %v448, %v2243
        %v2500 = vmul.f32 %v449, %v2244
        %v2501 = vmul.f32 %v450, %v2245
        %v2502 = vmul.f32 %v451, %v2246
        %v2503 = vmul.f32 %v452, %v2247
        %v2504 = vmul.f32 %v453, %v2248
        %v2505 = vmul.f32 %v454, %v2249
        %v2506 = vmul.f32 %v455, %v2250
        %v2507 = vmul.f32 %v456, %v2251
        %v2508 = vmul.f32 %v457, %v2252
        %v2509 = vmul.f32 %v458, %v2253
        %v2510 = vmul.f32 %v459, %v2254
        %v2511 = vmul.f32 %v460, %v2255
        %v2512 = vmul.f32 %v461, %v2256
        %v2513 = vmul.f32 %v462, %v2257
        %v2514 = vmul.f32 %v463, %v2258
        %v2515 = vmul.f32 %v464, %v2259
        %v2516 = vmul.f32 %v465, %v2260
        %v2517 = vmul.f32 %v466, %v2261
        %v2518 = vmul.f32 %v467, %v2262
        %v2519 = vmul.f32 %v468, %v2263
        %v2520 = vmul.f32 %v469, %v2264
        %v2521 = vmul.f32 %v470, %v2265
        %v2522 = vmul.f32 %v471, %v2266
        %v2523 = vmul.f32 %v472, %v2267
        %v2524 = vmul.f32 %v473, %v2268
        %v2525 = vmul.f32 %v474, %v2269
        %v2526 = vmul.f32 %v475, %v2270
        %v2527 = vmul.f32 %v476, %v2271
        %v2528 = vmul.f32 %v477, %v2272
        %v2529 = vmul.f32 %v478, %v2273
        %v2530 = vmul.f32 %v479, %v2274
        %v2531 = vmul.f32 %v480, %v2275
        %v2532 = vmul.f32 %v481, %v2276
        %v2533 = vmul.f32 %v482, %v2277
        %v2534 = vmul.f32 %v483, %v2278
        %v2535 = vmul.f32 %v484, %v2279
        %v2536 = vmul.f32 %v485, %v2280
        %v2537 = vmul.f32 %v486, %v2281
        %v2538 = vmul.f32 %v487, %v2282
        %v2539 = vmul.f32 %v488, %v2283
        %v2540 = vmul.f32 %v489, %v2284
        %v2541 = vmul.f32 %v490, %v2285
        %v2542 = vmul.f32 %v491, %v2286
        %v2543 = vmul.f32 %v492, %v2287
        %v2544 = vmul.f32 %v493, %v2288
        %v2545 = vmul.f32 %v494, %v2289
        %v2546 = vmul.f32 %v495, %v2290
        %v2547 = vmul.f32 %v496, %v2291
        %v2548 = vmul.f32 %v497, %v2292
        %v2549 = vmul.f32 %v498, %v2293
        %v2550 = vmul.f32 %v499, %v2294
        %v2551 = vmul.f32 %v500, %v2295
        %v2552 = vmul.f32 %v501, %v2296
        %v2553 = vmul.f32 %v502, %v2297
        %v2554 = vmul.f32 %v503, %v2298
        %v2555 = vmul.f32 %v504, %v2299
        %v2556 = vmul.f32 %v505, %v2300
        %v2557 = vmul.f32 %v506, %v2301
        %v2558 = vmul.f32 %v507, %v2302
        %v2559 = vmul.f32 %v508, %v2303
        %v2560 = vmul.f32 %v509, %v2304
        %v2561 = vmul.f32 %v510, %v2305
        %v2562 = vmul.f32 %v511, %v2306
        %v2563 = vmul.f32 %v512, %v2307
        %v2564 = vmul.f32 %v513, %v2308
        %v2565 = vmul.f32 %v514, %v2309
        %v2566 = vmul.f32 %v515, %v2310
        %v2567 = vmul.f32 %v516, %v2311
        %v2568 = vmul.f32 %v517, %v2312
        %v2569 = vmul.f32 %v518, %v2313
        %v2570 = vmul.f32 %v519, %v2314
        %v2571 = vmul.f32 %v520, %v2315
        %v2572 = vmul.f32 %v521, %v2316
        %v2573 = vmul.f32 %v522, %v2317
        %v2574 = vmul.f32 %v523, %v2318
        %v2575 = vmul.f32 %v524, %v2319
        %v2576 = vmul.f32 %v525, %v2320
        %v2577 = vmul.f32 %v526, %v2321
        %v2578 = vmul.f32 %v527, %v2322
        %v2579 = vmul.f32 %v528, %v2323
        %v2580 = vmul.f32 %v529, %v2324
        %v2581 = vmul.f32 %v530, %v2325
        %v2582 = vmul.f32 %v531, %v2326
        %v2583 = vmul.f32 %v532, %v2327
        %v2584 = vmul.f32 %v533, %v2328
        %v2585 = vmul.f32 %v534, %v2329
        %v2586 = vmul.f32 %v535, %v2330
        %v2587 = vmul.f32 %v536, %v2331
        %v2588 = vmul.f32 %v537, %v2332
        %v2589 = vmul.f32 %v538, %v2333
        %2590 = vst [vmem:[%s282] sm:$0xff] %v2334
        %2591 = vst [vmem:[%s282 + $0x8] sm:$0xff] %v2335
        %2592 = vst [vmem:[%s282 + $0x10] sm:$0xff] %v2336
        %2593 = vst [vmem:[%s282 + $0x18] sm:$0xff] %v2337
        %2594 = vst [vmem:[%s282 + $0x20] sm:$0xff] %v2338
        %2595 = vst [vmem:[%s282 + $0x28] sm:$0xff] %v2339
        %2596 = vst [vmem:[%s282 + $0x30] sm:$0xff] %v2340
        %2597 = vst [vmem:[%s282 + $0x38] sm:$0xff] %v2341
        %2598 = vst [vmem:[%s282 + $0x40] sm:$0xff] %v2342
        %2599 = vst [vmem:[%s282 + $0x48] sm:$0xff] %v2343
        %2600 = vst [vmem:[%s282 + $0x50] sm:$0xff] %v2344
        %2601 = vst [vmem:[%s282 + $0x58] sm:$0xff] %v2345
        %2602 = vst [vmem:[%s282 + $0x60] sm:$0xff] %v2346
        %2603 = vst [vmem:[%s282 + $0x68] sm:$0xff] %v2347
        %2604 = vst [vmem:[%s282 + $0x70] sm:$0xff] %v2348
        %2605 = vst [vmem:[%s282 + $0x78] sm:$0xff] %v2349
        %2606 = vst [vmem:[%s282 + $0x80] sm:$0xff] %v2350
        %2607 = vst [vmem:[%s282 + $0x88] sm:$0xff] %v2351
        %2608 = vst [vmem:[%s282 + $0x90] sm:$0xff] %v2352
        %2609 = vst [vmem:[%s282 + $0x98] sm:$0xff] %v2353
        %2610 = vst [vmem:[%s282 + $0xa0] sm:$0xff] %v2354
        %2611 = vst [vmem:[%s282 + $0xa8] sm:$0xff] %v2355
        %2612 = vst [vmem:[%s282 + $0xb0] sm:$0xff] %v2356
        %2613 = vst [vmem:[%s282 + $0xb8] sm:$0xff] %v2357
        %2614 = vst [vmem:[%s282 + $0xc0] sm:$0xff] %v2358
        %2615 = vst [vmem:[%s282 + $0xc8] sm:$0xff] %v2359
        %2616 = vst [vmem:[%s282 + $0xd0] sm:$0xff] %v2360
        %2617 = vst [vmem:[%s282 + $0xd8] sm:$0xff] %v2361
        %2618 = vst [vmem:[%s282 + $0xe0] sm:$0xff] %v2362
        %2619 = vst [vmem:[%s282 + $0xe8] sm:$0xff] %v2363
        %2620 = vst [vmem:[%s282 + $0xf0] sm:$0xff] %v2364
        %2621 = vst [vmem:[%s282 + $0xf8] sm:$0xff] %v2365
        %2622 = vst [vmem:[%s282 + $0x100] sm:$0xff] %v2366
        %2623 = vst [vmem:[%s282 + $0x108] sm:$0xff] %v2367
        %2624 = vst [vmem:[%s282 + $0x110] sm:$0xff] %v2368
        %2625 = vst [vmem:[%s282 + $0x118] sm:$0xff] %v2369
        %2626 = vst [vmem:[%s282 + $0x120] sm:$0xff] %v2370
        %2627 = vst [vmem:[%s282 + $0x128] sm:$0xff] %v2371
        %2628 = vst [vmem:[%s282 + $0x130] sm:$0xff] %v2372
        %2629 = vst [vmem:[%s282 + $0x138] sm:$0xff] %v2373
        %2630 = vst [vmem:[%s282 + $0x140] sm:$0xff] %v2374
        %2631 = vst [vmem:[%s282 + $0x148] sm:$0xff] %v2375
        %2632 = vst [vmem:[%s282 + $0x150] sm:$0xff] %v2376
        %2633 = vst [vmem:[%s282 + $0x158] sm:$0xff] %v2377
        %2634 = vst [vmem:[%s282 + $0x160] sm:$0xff] %v2378
        %2635 = vst [vmem:[%s282 + $0x168] sm:$0xff] %v2379
        %2636 = vst [vmem:[%s282 + $0x170] sm:$0xff] %v2380
        %2637 = vst [vmem:[%s282 + $0x178] sm:$0xff] %v2381
        %2638 = vst [vmem:[%s282 + $0x180] sm:$0xff] %v2382
        %2639 = vst [vmem:[%s282 + $0x188] sm:$0xff] %v2383
        %2640 = vst [vmem:[%s282 + $0x190] sm:$0xff] %v2384
        %2641 = vst [vmem:[%s282 + $0x198] sm:$0xff] %v2385
        %2642 = vst [vmem:[%s282 + $0x1a0] sm:$0xff] %v2386
        %2643 = vst [vmem:[%s282 + $0x1a8] sm:$0xff] %v2387
        %2644 = vst [vmem:[%s282 + $0x1b0] sm:$0xff] %v2388
        %2645 = vst [vmem:[%s282 + $0x1b8] sm:$0xff] %v2389
        %2646 = vst [vmem:[%s282 + $0x1c0] sm:$0xff] %v2390
        %2647 = vst [vmem:[%s282 + $0x1c8] sm:$0xff] %v2391
        %2648 = vst [vmem:[%s282 + $0x1d0] sm:$0xff] %v2392
        %2649 = vst [vmem:[%s282 + $0x1d8] sm:$0xff] %v2393
        %2650 = vst [vmem:[%s282 + $0x1e0] sm:$0xff] %v2394
        %2651 = vst [vmem:[%s282 + $0x1e8] sm:$0xff] %v2395
        %2652 = vst [vmem:[%s282 + $0x1f0] sm:$0xff] %v2396
        %2653 = vst [vmem:[%s282 + $0x1f8] sm:$0xff] %v2397
        %2654 = vst [vmem:[%s282 + $0x200] sm:$0xff] %v2398
        %2655 = vst [vmem:[%s282 + $0x208] sm:$0xff] %v2399
        %2656 = vst [vmem:[%s282 + $0x210] sm:$0xff] %v2400
        %2657 = vst [vmem:[%s282 + $0x218] sm:$0xff] %v2401
        %2658 = vst [vmem:[%s282 + $0x220] sm:$0xff] %v2402
        %2659 = vst [vmem:[%s282 + $0x228] sm:$0xff] %v2403
        %2660 = vst [vmem:[%s282 + $0x230] sm:$0xff] %v2404
        %2661 = vst [vmem:[%s282 + $0x238] sm:$0xff] %v2405
        %2662 = vst [vmem:[%s282 + $0x240] sm:$0xff] %v2406
        %2663 = vst [vmem:[%s282 + $0x248] sm:$0xff] %v2407
        %2664 = vst [vmem:[%s282 + $0x250] sm:$0xff] %v2408
        %2665 = vst [vmem:[%s282 + $0x258] sm:$0xff] %v2409
        %2666 = vst [vmem:[%s282 + $0x260] sm:$0xff] %v2410
        %2667 = vst [vmem:[%s282 + $0x268] sm:$0xff] %v2411
        %2668 = vst [vmem:[%s282 + $0x270] sm:$0xff] %v2412
        %2669 = vst [vmem:[%s282 + $0x278] sm:$0xff] %v2413
        %2670 = vst [vmem:[%s282 + $0x280] sm:$0xff] %v2414
        %2671 = vst [vmem:[%s282 + $0x288] sm:$0xff] %v2415
        %2672 = vst [vmem:[%s282 + $0x290] sm:$0xff] %v2416
        %2673 = vst [vmem:[%s282 + $0x298] sm:$0xff] %v2417
        %2674 = vst [vmem:[%s282 + $0x2a0] sm:$0xff] %v2418
        %2675 = vst [vmem:[%s282 + $0x2a8] sm:$0xff] %v2419
        %2676 = vst [vmem:[%s282 + $0x2b0] sm:$0xff] %v2420
        %2677 = vst [vmem:[%s282 + $0x2b8] sm:$0xff] %v2421
        %2678 = vst [vmem:[%s282 + $0x2c0] sm:$0xff] %v2422
        %2679 = vst [vmem:[%s282 + $0x2c8] sm:$0xff] %v2423
        %2680 = vst [vmem:[%s282 + $0x2d0] sm:$0xff] %v2424
        %2681 = vst [vmem:[%s282 + $0x2d8] sm:$0xff] %v2425
        %2682 = vst [vmem:[%s282 + $0x2e0] sm:$0xff] %v2426
        %2683 = vst [vmem:[%s282 + $0x2e8] sm:$0xff] %v2427
        %2684 = vst [vmem:[%s282 + $0x2f0] sm:$0xff] %v2428
        %2685 = vst [vmem:[%s282 + $0x2f8] sm:$0xff] %v2429
        %2686 = vst [vmem:[%s282 + $0x300] sm:$0xff] %v2430
        %2687 = vst [vmem:[%s282 + $0x308] sm:$0xff] %v2431
        %2688 = vst [vmem:[%s282 + $0x310] sm:$0xff] %v2432
        %2689 = vst [vmem:[%s282 + $0x318] sm:$0xff] %v2433
        %2690 = vst [vmem:[%s282 + $0x320] sm:$0xff] %v2434
        %2691 = vst [vmem:[%s282 + $0x328] sm:$0xff] %v2435
        %2692 = vst [vmem:[%s282 + $0x330] sm:$0xff] %v2436
        %2693 = vst [vmem:[%s282 + $0x338] sm:$0xff] %v2437
        %2694 = vst [vmem:[%s282 + $0x340] sm:$0xff] %v2438
        %2695 = vst [vmem:[%s282 + $0x348] sm:$0xff] %v2439
        %2696 = vst [vmem:[%s282 + $0x350] sm:$0xff] %v2440
        %2697 = vst [vmem:[%s282 + $0x358] sm:$0xff] %v2441
        %2698 = vst [vmem:[%s282 + $0x360] sm:$0xff] %v2442
        %2699 = vst [vmem:[%s282 + $0x368] sm:$0xff] %v2443
        %2700 = vst [vmem:[%s282 + $0x370] sm:$0xff] %v2444
        %2701 = vst [vmem:[%s282 + $0x378] sm:$0xff] %v2445
        %2702 = vst [vmem:[%s282 + $0x380] sm:$0xff] %v2446
        %2703 = vst [vmem:[%s282 + $0x388] sm:$0xff] %v2447
        %2704 = vst [vmem:[%s282 + $0x390] sm:$0xff] %v2448
        %2705 = vst [vmem:[%s282 + $0x398] sm:$0xff] %v2449
        %2706 = vst [vmem:[%s282 + $0x3a0] sm:$0xff] %v2450
        %2707 = vst [vmem:[%s282 + $0x3a8] sm:$0xff] %v2451
        %2708 = vst [vmem:[%s282 + $0x3b0] sm:$0xff] %v2452
        %2709 = vst [vmem:[%s282 + $0x3b8] sm:$0xff] %v2453
        %2710 = vst [vmem:[%s282 + $0x3c0] sm:$0xff] %v2454
        %2711 = vst [vmem:[%s282 + $0x3c8] sm:$0xff] %v2455
        %2712 = vst [vmem:[%s282 + $0x3d0] sm:$0xff] %v2456
        %2713 = vst [vmem:[%s282 + $0x3d8] sm:$0xff] %v2457
        %2714 = vst [vmem:[%s282 + $0x3e0] sm:$0xff] %v2458
        %2715 = vst [vmem:[%s282 + $0x3e8] sm:$0xff] %v2459
        %2716 = vst [vmem:[%s282 + $0x3f0] sm:$0xff] %v2460
        %2717 = vst [vmem:[%s282 + $0x3f8] sm:$0xff] %v2461
        %2718 = vst [vmem:[%s282 + $0x400] sm:$0xff] %v2462
        %2719 = vst [vmem:[%s282 + $0x408] sm:$0xff] %v2463
        %2720 = vst [vmem:[%s282 + $0x410] sm:$0xff] %v2464
        %2721 = vst [vmem:[%s282 + $0x418] sm:$0xff] %v2465
        %2722 = vst [vmem:[%s282 + $0x420] sm:$0xff] %v2466
        %2723 = vst [vmem:[%s282 + $0x428] sm:$0xff] %v2467
        %2724 = vst [vmem:[%s282 + $0x430] sm:$0xff] %v2468
        %2725 = vst [vmem:[%s282 + $0x438] sm:$0xff] %v2469
        %2726 = vst [vmem:[%s282 + $0x440] sm:$0xff] %v2470
        %2727 = vst [vmem:[%s282 + $0x448] sm:$0xff] %v2471
        %2728 = vst [vmem:[%s282 + $0x450] sm:$0xff] %v2472
        %2729 = vst [vmem:[%s282 + $0x458] sm:$0xff] %v2473
        %2730 = vst [vmem:[%s282 + $0x460] sm:$0xff] %v2474
        %2731 = vst [vmem:[%s282 + $0x468] sm:$0xff] %v2475
        %2732 = vst [vmem:[%s282 + $0x470] sm:$0xff] %v2476
        %2733 = vst [vmem:[%s282 + $0x478] sm:$0xff] %v2477
        %2734 = vst [vmem:[%s282 + $0x480] sm:$0xff] %v2478
        %2735 = vst [vmem:[%s282 + $0x488] sm:$0xff] %v2479
        %2736 = vst [vmem:[%s282 + $0x490] sm:$0xff] %v2480
        %2737 = vst [vmem:[%s282 + $0x498] sm:$0xff] %v2481
        %2738 = vst [vmem:[%s282 + $0x4a0] sm:$0xff] %v2482
        %2739 = vst [vmem:[%s282 + $0x4a8] sm:$0xff] %v2483
        %2740 = vst [vmem:[%s282 + $0x4b0] sm:$0xff] %v2484
        %2741 = vst [vmem:[%s282 + $0x4b8] sm:$0xff] %v2485
        %2742 = vst [vmem:[%s282 + $0x4c0] sm:$0xff] %v2486
        %2743 = vst [vmem:[%s282 + $0x4c8] sm:$0xff] %v2487
        %2744 = vst [vmem:[%s282 + $0x4d0] sm:$0xff] %v2488
        %2745 = vst [vmem:[%s282 + $0x4d8] sm:$0xff] %v2489
        %2746 = vst [vmem:[%s282 + $0x4e0] sm:$0xff] %v2490
        %2747 = vst [vmem:[%s282 + $0x4e8] sm:$0xff] %v2491
        %2748 = vst [vmem:[%s282 + $0x4f0] sm:$0xff] %v2492
        %2749 = vst [vmem:[%s282 + $0x4f8] sm:$0xff] %v2493
        %2750 = vst [vmem:[%s282 + $0x500] sm:$0xff] %v2494
        %2751 = vst [vmem:[%s282 + $0x508] sm:$0xff] %v2495
        %2752 = vst [vmem:[%s282 + $0x510] sm:$0xff] %v2496
        %2753 = vst [vmem:[%s282 + $0x518] sm:$0xff] %v2497
        %2754 = vst [vmem:[%s282 + $0x520] sm:$0xff] %v2498
        %2755 = vst [vmem:[%s282 + $0x528] sm:$0xff] %v2499
        %2756 = vst [vmem:[%s282 + $0x530] sm:$0xff] %v2500
        %2757 = vst [vmem:[%s282 + $0x538] sm:$0xff] %v2501
        %2758 = vst [vmem:[%s282 + $0x540] sm:$0xff] %v2502
        %2759 = vst [vmem:[%s282 + $0x548] sm:$0xff] %v2503
        %2760 = vst [vmem:[%s282 + $0x550] sm:$0xff] %v2504
        %2761 = vst [vmem:[%s282 + $0x558] sm:$0xff] %v2505
        %2762 = vst [vmem:[%s282 + $0x560] sm:$0xff] %v2506
        %2763 = vst [vmem:[%s282 + $0x568] sm:$0xff] %v2507
        %2764 = vst [vmem:[%s282 + $0x570] sm:$0xff] %v2508
        %2765 = vst [vmem:[%s282 + $0x578] sm:$0xff] %v2509
        %2766 = vst [vmem:[%s282 + $0x580] sm:$0xff] %v2510
        %2767 = vst [vmem:[%s282 + $0x588] sm:$0xff] %v2511
        %2768 = vst [vmem:[%s282 + $0x590] sm:$0xff] %v2512
        %2769 = vst [vmem:[%s282 + $0x598] sm:$0xff] %v2513
        %2770 = vst [vmem:[%s282 + $0x5a0] sm:$0xff] %v2514
        %2771 = vst [vmem:[%s282 + $0x5a8] sm:$0xff] %v2515
        %2772 = vst [vmem:[%s282 + $0x5b0] sm:$0xff] %v2516
        %2773 = vst [vmem:[%s282 + $0x5b8] sm:$0xff] %v2517
        %2774 = vst [vmem:[%s282 + $0x5c0] sm:$0xff] %v2518
        %2775 = vst [vmem:[%s282 + $0x5c8] sm:$0xff] %v2519
        %2776 = vst [vmem:[%s282 + $0x5d0] sm:$0xff] %v2520
        %2777 = vst [vmem:[%s282 + $0x5d8] sm:$0xff] %v2521
        %2778 = vst [vmem:[%s282 + $0x5e0] sm:$0xff] %v2522
        %2779 = vst [vmem:[%s282 + $0x5e8] sm:$0xff] %v2523
        %2780 = vst [vmem:[%s282 + $0x5f0] sm:$0xff] %v2524
        %2781 = vst [vmem:[%s282 + $0x5f8] sm:$0xff] %v2525
        %2782 = vst [vmem:[%s282 + $0x600] sm:$0xff] %v2526
        %2783 = vst [vmem:[%s282 + $0x608] sm:$0xff] %v2527
        %2784 = vst [vmem:[%s282 + $0x610] sm:$0xff] %v2528
        %2785 = vst [vmem:[%s282 + $0x618] sm:$0xff] %v2529
        %2786 = vst [vmem:[%s282 + $0x620] sm:$0xff] %v2530
        %2787 = vst [vmem:[%s282 + $0x628] sm:$0xff] %v2531
        %2788 = vst [vmem:[%s282 + $0x630] sm:$0xff] %v2532
        %2789 = vst [vmem:[%s282 + $0x638] sm:$0xff] %v2533
        %2790 = vst [vmem:[%s282 + $0x640] sm:$0xff] %v2534
        %2791 = vst [vmem:[%s282 + $0x648] sm:$0xff] %v2535
        %2792 = vst [vmem:[%s282 + $0x650] sm:$0xff] %v2536
        %2793 = vst [vmem:[%s282 + $0x658] sm:$0xff] %v2537
        %2794 = vst [vmem:[%s282 + $0x660] sm:$0xff] %v2538
        %2795 = vst [vmem:[%s282 + $0x668] sm:$0xff] %v2539
        %2796 = vst [vmem:[%s282 + $0x670] sm:$0xff] %v2540
        %2797 = vst [vmem:[%s282 + $0x678] sm:$0xff] %v2541
        %2798 = vst [vmem:[%s282 + $0x680] sm:$0xff] %v2542
        %2799 = vst [vmem:[%s282 + $0x688] sm:$0xff] %v2543
        %2800 = vst [vmem:[%s282 + $0x690] sm:$0xff] %v2544
        %2801 = vst [vmem:[%s282 + $0x698] sm:$0xff] %v2545
        %2802 = vst [vmem:[%s282 + $0x6a0] sm:$0xff] %v2546
        %2803 = vst [vmem:[%s282 + $0x6a8] sm:$0xff] %v2547
        %2804 = vst [vmem:[%s282 + $0x6b0] sm:$0xff] %v2548
        %2805 = vst [vmem:[%s282 + $0x6b8] sm:$0xff] %v2549
        %2806 = vst [vmem:[%s282 + $0x6c0] sm:$0xff] %v2550
        %2807 = vst [vmem:[%s282 + $0x6c8] sm:$0xff] %v2551
        %2808 = vst [vmem:[%s282 + $0x6d0] sm:$0xff] %v2552
        %2809 = vst [vmem:[%s282 + $0x6d8] sm:$0xff] %v2553
        %2810 = vst [vmem:[%s282 + $0x6e0] sm:$0xff] %v2554
        %2811 = vst [vmem:[%s282 + $0x6e8] sm:$0xff] %v2555
        %2812 = vst [vmem:[%s282 + $0x6f0] sm:$0xff] %v2556
        %2813 = vst [vmem:[%s282 + $0x6f8] sm:$0xff] %v2557
        %2814 = vst [vmem:[%s282 + $0x700] sm:$0xff] %v2558
        %2815 = vst [vmem:[%s282 + $0x708] sm:$0xff] %v2559
        %2816 = vst [vmem:[%s282 + $0x710] sm:$0xff] %v2560
        %2817 = vst [vmem:[%s282 + $0x718] sm:$0xff] %v2561
        %2818 = vst [vmem:[%s282 + $0x720] sm:$0xff] %v2562
        %2819 = vst [vmem:[%s282 + $0x728] sm:$0xff] %v2563
        %2820 = vst [vmem:[%s282 + $0x730] sm:$0xff] %v2564
        %2821 = vst [vmem:[%s282 + $0x738] sm:$0xff] %v2565
        %2822 = vst [vmem:[%s282 + $0x740] sm:$0xff] %v2566
        %2823 = vst [vmem:[%s282 + $0x748] sm:$0xff] %v2567
        %2824 = vst [vmem:[%s282 + $0x750] sm:$0xff] %v2568
        %2825 = vst [vmem:[%s282 + $0x758] sm:$0xff] %v2569
        %2826 = vst [vmem:[%s282 + $0x760] sm:$0xff] %v2570
        %2827 = vst [vmem:[%s282 + $0x768] sm:$0xff] %v2571
        %2828 = vst [vmem:[%s282 + $0x770] sm:$0xff] %v2572
        %2829 = vst [vmem:[%s282 + $0x778] sm:$0xff] %v2573
        %2830 = vst [vmem:[%s282 + $0x780] sm:$0xff] %v2574
        %2831 = vst [vmem:[%s282 + $0x788] sm:$0xff] %v2575
        %2832 = vst [vmem:[%s282 + $0x790] sm:$0xff] %v2576
        %2833 = vst [vmem:[%s282 + $0x798] sm:$0xff] %v2577
        %2834 = vst [vmem:[%s282 + $0x7a0] sm:$0xff] %v2578
        %2835 = vst [vmem:[%s282 + $0x7a8] sm:$0xff] %v2579
        %2836 = vst [vmem:[%s282 + $0x7b0] sm:$0xff] %v2580
        %2837 = vst [vmem:[%s282 + $0x7b8] sm:$0xff] %v2581
        %2838 = vst [vmem:[%s282 + $0x7c0] sm:$0xff] %v2582
        %2839 = vst [vmem:[%s282 + $0x7c8] sm:$0xff] %v2583
        %2840 = vst [vmem:[%s282 + $0x7d0] sm:$0xff] %v2584
        %2841 = vst [vmem:[%s282 + $0x7d8] sm:$0xff] %v2585
        %2842 = vst [vmem:[%s282 + $0x7e0] sm:$0xff] %v2586
        %2843 = vst [vmem:[%s282 + $0x7e8] sm:$0xff] %v2587
        %2844 = vst [vmem:[%s282 + $0x7f0] sm:$0xff] %v2588
        %2845 = vst [vmem:[%s282 + $0x7f8] sm:$0xff] %v2589
        %s2846 = sand.u32 %s163, 1
        %s2847 = scalar_lea.sflag [#allocation4], %s2846
        %s2848 = sand.u32 %s163, 1
        %s2849 = smul.addr %s2848, 2048
        %s2850 = scalar_lea.vmem [#allocation7], %s2849
        // Predicated region
        $region53: #{tpu_custom_call.1} parent=43 // pred_check
          %p2851 = pneg %p173
        $region54: #{tpu_custom_call.1} parent=43 // pred_check_branch
          %2853 = sbr.rel (%p2851) target = $region56
        $region55: #{tpu_custom_call.1} parent=43 // pred_region
          %s2855 = ssub.s32 32768, 32768
          %2856 = vsyncadd %s2847, %s2855
          %s2857 = smul.addr %s24, 256
          %s2858 = smul.addr %s2857, 128
          %s2859 = scalar_lea.hbm %s6, %s2858
          %s2860 = sshll.u32 %s2850, 4
          %s2861 = int_to_ptr.vmem [resolvable:$true] %s2860
          %2866 = dma.vmem_to_hbm [thread:$0]  %s2861, 32768, %s2859, %s2847, 4096, 4096, 256
        $region56: #{tpu_custom_call.1} parent=43 // pred_fallthru
          _
      $region44: #{tpu_custom_call.1} parent=5 // pred_fallthru
        _
      %p2867 = scmp.le.s32.totalorder 2, %s19
      // Predicated region
      $region57: #{tpu_custom_call.1} parent=5 // pred_check
        %p2868 = pneg %p2867
      $region58: #{tpu_custom_call.1} parent=5 // pred_check_branch
        %2870 = sbr.rel (%p2868) target = $region60
      $region59: #{tpu_custom_call.1} parent=5 // pred_region
        %s2871 = ssub.s32 %s19, 2
        // Predicated region
        $region61: #{tpu_custom_call.1} parent=59 // pred_check
          %p2872 = pneg %p179
        $region62: #{tpu_custom_call.1} parent=59 // pred_check_branch
          %2874 = sbr.rel (%p2872) target = $region64
        $region63: #{tpu_custom_call.1} parent=59 // pred_region
          %s2875 = sand.u32 %s164, 1
          %s2876 = scalar_lea.sflag [#allocation4], %s2875
          %s2877 = sand.u32 %s164, 1
          %s2878 = smul.addr %s2877, 2048
          %s2879 = scalar_lea.vmem [#allocation7], %s2878
          %2880 = dma.done %s2876, 32768
        $region64: #{tpu_custom_call.1} parent=59 // pred_fallthru
          _
      $region60: #{tpu_custom_call.1} parent=5 // pred_fallthru
        _
    $region6: #{tpu_custom_call.1} parent=1 // loop_footer
      %s23 = sadd.s32 1, %s19
    $region7: #{tpu_custom_call.1} parent=1 // loop_footer_branch
      %18 = sbr.rel target = $region3
    $region8: #{tpu_custom_call.1} parent=1 // loop_exit
      _
    %2881 = vsyncpa [#allocation3], 1
    %s2882 = scalar_lea.sflag [#allocation3], 1
    %2883 = vsyncpa %s2882, 1
    %2884 = vsyncpa [#allocation6], 1
    %2885 = vsyncpa [#allocation4], 1
    %s2886 = scalar_lea.sflag [#allocation4], 1
    %2887 = vsyncpa %s2886, 1

</llo_original>
